<compile_context>
chip_gen: v5e
topology: v5e:2x2
jax: 0.10.0
libtpu: 0.0.40
codegen_flags: <defaults>
</compile_context>

<pallas_src>
import functools

import numpy as np

import jax
import jax.numpy as jnp
from jax.experimental import pallas as pl
from jax.experimental.pallas import tpu as pltpu


# ----------------------------------------------------------------------------
# Kernel 1: fused body (3x3/s2 conv) + head (1x1) + cls (1x1)
# ----------------------------------------------------------------------------
def _fused_stack_kernel(xph_ref, wb_ref, bb_ref, whd_ref, bhd_ref,
                        wcl_ref, bcl_ref, o_ref, *, oh, ow):
    """One batch element: phases -> conv(relu) -> head(relu) -> cls logits."""
    cin = xph_ref.shape[-1]
    cb = wb_ref.shape[-1]
    classes = wcl_ref.shape[-1]
    P = oh * ow

    # Load the 4 stride-phases once (each (oh+1, ow+1, cin), bf16).
    phases = [xph_ref[0, k] for k in range(4)]

    # 3x3 stride-2 conv as 9 shifted accumulating dots (f32 accumulator).
    acc = jnp.zeros((P, cb), jnp.float32)
    for t in range(9):
        dy, dx = divmod(t, 3)
        ph = phases[2 * (dy % 2) + (dx % 2)]
        ro, co = dy // 2, dx // 2
        tap = ph[ro:ro + oh, co:co + ow, :]                  # (oh, ow, cin)
        acc = acc + jnp.dot(tap.reshape(P, cin), wb_ref[t],
                            preferred_element_type=jnp.float32)

    xb = jnp.maximum(acc + bb_ref[...], 0.0)                 # (P, cb) f32

    xo = jnp.dot(xb.astype(jnp.bfloat16), whd_ref[...],
                 preferred_element_type=jnp.float32) + bhd_ref[...]
    xo = jnp.maximum(xo, 0.0)                                # (P, ch) f32

    lg = jnp.dot(xo.astype(jnp.bfloat16), wcl_ref[...],
                 preferred_element_type=jnp.float32) + bcl_ref[...]
    o_ref[0] = lg.reshape(oh, ow, classes)                   # low-res logits


def fused_body_head_cls(xph, params, *, oh, ow):
    """xph: (B, 4, oh+1, ow+1, Cin) bf16 -> logits (B, oh, ow, classes) f32."""
    B = xph.shape[0]
    Cin = xph.shape[-1]
    wb = params["body_w"].astype(jnp.bfloat16)               # (9, Cin, Cb)
    whd = params["head_w"].astype(jnp.bfloat16)              # (Cb, Ch)
    wcl = params["cls_w"].astype(jnp.bfloat16)               # (Ch, classes)
    bb = params["body_b"].reshape(1, -1).astype(jnp.float32)
    bhd = params["head_b"].reshape(1, -1).astype(jnp.float32)
    bcl = params["cls_b"].reshape(1, -1).astype(jnp.float32)
    Cb, Ch, classes = wb.shape[-1], whd.shape[-1], wcl.shape[-1]

    return pl.pallas_call(
        functools.partial(_fused_stack_kernel, oh=oh, ow=ow),
        out_shape=jax.ShapeDtypeStruct((B, oh, ow, classes), jnp.float32),
        grid=(B,),
        in_specs=[
            pl.BlockSpec((1, 4, oh + 1, ow + 1, Cin),
                         lambda b: (b, 0, 0, 0, 0)),
            pl.BlockSpec((9, Cin, Cb), lambda b: (0, 0, 0)),
            pl.BlockSpec((1, Cb), lambda b: (0, 0)),
            pl.BlockSpec((Cb, Ch), lambda b: (0, 0)),
            pl.BlockSpec((1, Ch), lambda b: (0, 0)),
            pl.BlockSpec((Ch, classes), lambda b: (0, 0)),
            pl.BlockSpec((1, classes), lambda b: (0, 0)),
        ],
        out_specs=pl.BlockSpec((1, oh, ow, classes), lambda b: (b, 0, 0, 0)),
        compiler_params=pltpu.CompilerParams(
            dimension_semantics=("parallel",),
            vmem_limit_bytes=32 * 1024 * 1024),
    )(xph, wb, bb, whd, bhd, wcl, bcl)


# ----------------------------------------------------------------------------
# Kernel 2: separable bilinear upsample (align_corners=False), NCHW in/out
# ----------------------------------------------------------------------------
def _bilinear_upsample_kernel(wrow_ref, wcolT_ref, x_ref, o_ref):
    """out[b, c] = Wrow @ x[b, c] @ Wcol^T  (lane axis = output width)."""
    x = x_ref[0, 0]                                                  # (h, w)
    t = jnp.dot(wrow_ref[...], x, preferred_element_type=jnp.float32)  # (H, w)
    o = jnp.dot(t.astype(jnp.bfloat16), wcolT_ref[...],
                preferred_element_type=jnp.float32)                  # (H, W)
    o_ref[0, 0] = o.astype(o_ref.dtype)


def _bilinear_axis_matrix_np(out_size, in_size):
    """(out_size, in_size) interpolation weights, align_corners=False (numpy,
    built at trace time -> compile-time constant)."""
    scale = in_size / out_size
    dst = np.arange(out_size, dtype=np.float64)
    src = (dst + 0.5) * scale - 0.5
    src = np.clip(src, 0.0, in_size - 1)
    i0 = np.minimum(np.floor(src).astype(np.int64), in_size - 1)
    i1 = np.minimum(i0 + 1, in_size - 1)
    w1 = src - i0
    w0 = 1.0 - w1
    mat = np.zeros((out_size, in_size), np.float32)
    rows = np.arange(out_size)
    mat[rows, i0] += w0.astype(np.float32)
    mat[rows, i1] += w1.astype(np.float32)
    return mat


def bilinear_upsample_nchw(x_lowres_nchw, out_h, out_w):
    """(B, C, h, w) -> (B, C, out_h, out_w), bilinear, align_corners=False."""
    B, C, h, w = x_lowres_nchw.shape
    wrow = jnp.asarray(_bilinear_axis_matrix_np(out_h, h), jnp.bfloat16)    # (H, h)
    wcolT = jnp.asarray(_bilinear_axis_matrix_np(out_w, w).T, jnp.bfloat16)  # (w, W)
    xb = x_lowres_nchw.astype(jnp.bfloat16)

    return pl.pallas_call(
        _bilinear_upsample_kernel,
        out_shape=jax.ShapeDtypeStruct((B, C, out_h, out_w), jnp.float32),
        grid=(B, C),
        in_specs=[
            pl.BlockSpec((out_h, h), lambda b, c: (0, 0)),
            pl.BlockSpec((w, out_w), lambda b, c: (0, 0)),
            pl.BlockSpec((1, 1, h, w), lambda b, c: (b, c, 0, 0)),
        ],
        out_specs=pl.BlockSpec((1, 1, out_h, out_w), lambda b, c: (b, c, 0, 0)),
        compiler_params=pltpu.CompilerParams(
            dimension_semantics=("parallel", "parallel"),
            vmem_limit_bytes=32 * 1024 * 1024),
    )(wrow, wcolT, xb)


# ----------------------------------------------------------------------------
# CompleteNetwork forward
# ----------------------------------------------------------------------------
def complete_network_forward(x_nchw, params):
    """x_nchw: (B, Cin, H, W) float32 -> sem_logits (B, classes, H, W)."""
    B, Cin, H, W = x_nchw.shape

    # NCHW -> NHWC (channels on lanes for the conv stack).
    x = jnp.transpose(x_nchw, (0, 2, 3, 1))

    # Pad (pad=1) and phase-split by the conv stride (space-to-depth): avoids
    # ever materializing the 9x im2col expansion in HBM (1x the input bytes).
    oh = (H + 2 - 3) // 2 + 1
    ow = (W + 2 - 3) // 2 + 1
    Hp_e, Wp_e = 2 * (oh + 1), 2 * (ow + 1)
    xpad = jnp.pad(x, ((0, 0), (1, Hp_e - H - 1), (1, Wp_e - W - 1), (0, 0)))
    xph = xpad.reshape(B, oh + 1, 2, ow + 1, 2, Cin)
    xph = jnp.transpose(xph, (0, 2, 4, 1, 3, 5))        # (B, 2, 2, oh+1, ow+1, Cin)
    xph = xph.reshape(B, 4, oh + 1, ow + 1, Cin).astype(jnp.bfloat16)

    # Fused body + head + cls -> low-res logits (B, oh, ow, classes).
    logits_nhwc = fused_body_head_cls(xph, params, oh=oh, ow=ow)

    # Tiny low-res transpose to channels-first so the upsample kernel writes
    # the full-resolution result directly in NCHW (lane-dense on W).
    logits_nchw = jnp.transpose(logits_nhwc, (0, 3, 1, 2))

    # F.interpolate(size=(H, W), mode='bilinear', align_corners=False),
    # separable: Wrow @ x @ Wcol^T per (batch, class).
    sem_logits = bilinear_upsample_nchw(logits_nchw, H, W)
    return sem_logits


def init_params(key, in_ch=4, body_ch=8, head_ch=16, classes=5):
    kb, kbb, kh, khb, kc, kcb = jax.random.split(key, 6)
    return {
        # body conv weight as (9, Cin, Cb); tap order (kh, kw).
        "body_w": 0.1 * jax.random.normal(kb, (9, in_ch, body_ch), jnp.float32),
        "body_b": 0.1 * jax.random.normal(kbb, (body_ch,), jnp.float32),
        "head_w": 0.1 * jax.random.normal(kh, (body_ch, head_ch), jnp.float32),
        "head_b": 0.1 * jax.random.normal(khb, (head_ch,), jnp.float32),
        "cls_w": 0.1 * jax.random.normal(kc, (head_ch, classes), jnp.float32),
        "cls_b": 0.1 * jax.random.normal(kcb, (classes,), jnp.float32),
    }


if __name__ == "__main__":
    B, Cin, H, W = 2, 4, 16, 16
    classes = 5

    root = jax.random.PRNGKey(0)
    kx, kp = jax.random.split(root)
    x = jax.random.normal(kx, (B, Cin, H, W), jnp.float32)
    params = init_params(kp, in_ch=Cin, body_ch=8, head_ch=16, classes=classes)

    fwd = jax.jit(complete_network_forward)
    out = jax.block_until_ready(fwd(x, params))

    assert out.shape == (B, classes, H, W), out.shape
    assert bool(jnp.all(jnp.isfinite(out)))
    print("KERNEL_OK")
</pallas_src>

<mosaic_0001>
module attributes {stable_mosaic.version = 11 : i64} {
  func.func @_bilinear_upsample_kernel(%arg0: i32, %arg1: i32, %arg2: memref<16x8xbf16, #tpu.memory_space<vmem>>, %arg3: memref<8x16xbf16, #tpu.memory_space<vmem>>, %arg4: memref<1x1x8x8xbf16, #tpu.memory_space<vmem>>, %arg5: memref<1x1x16x16xf32, #tpu.memory_space<vmem>>) attributes {dimension_semantics = [#tpu.dimension_semantics<parallel>, #tpu.dimension_semantics<parallel>], iteration_bounds = array<i64: 2, 5>, scalar_prefetch = 0 : i64, scratch_operands = 0 : i64, tpu.core_type = #tpu.core_type<tc>, window_params = [{pipeline_mode = #tpu.pipeline_mode<synchronous>, transform_indices = @transform_0, window_bounds = array<i64: 16, 8>}, {pipeline_mode = #tpu.pipeline_mode<synchronous>, transform_indices = @transform_1, window_bounds = array<i64: 8, 16>}, {transform_indices = @transform_2, window_bounds = array<i64: 1, 1, 8, 8>}, {transform_indices = @transform_3, window_bounds = array<i64: 1, 1, 16, 16>}]} {
    %c0 = arith.constant 0 : index
    %c0_0 = arith.constant 0 : index
    %c0_1 = arith.constant 0 : index
    %c0_2 = arith.constant 0 : index
    %0 = vector.load %arg4[%c0, %c0_0, %c0_1, %c0_2] : memref<1x1x8x8xbf16, #tpu.memory_space<vmem>>, vector<1x1x8x8xbf16>
    %1 = vector.shape_cast %0 : vector<1x1x8x8xbf16> to vector<8x8xbf16>
    %c0_3 = arith.constant 0 : index
    %c0_4 = arith.constant 0 : index
    %2 = vector.load %arg2[%c0_3, %c0_4] : memref<16x8xbf16, #tpu.memory_space<vmem>>, vector<16x8xbf16>
    %cst = arith.constant dense<0.000000e+00> : vector<16x8xf32>
    %3 = tpu.matmul %2, %1, %cst {dimension_numbers = #tpu.dot_dimension_numbers<[1], [0], [0], [1], [0, 0, 1, 1], [], []>} : vector<16x8xbf16>, vector<8x8xbf16>, vector<16x8xf32> -> vector<16x8xf32>
    %4 = arith.truncf %3 : vector<16x8xf32> to vector<16x8xbf16>
    %c0_5 = arith.constant 0 : index
    %c0_6 = arith.constant 0 : index
    %5 = vector.load %arg3[%c0_5, %c0_6] : memref<8x16xbf16, #tpu.memory_space<vmem>>, vector<8x16xbf16>
    %cst_7 = arith.constant dense<0.000000e+00> : vector<16x16xf32>
    %6 = tpu.matmul %4, %5, %cst_7 {dimension_numbers = #tpu.dot_dimension_numbers<[1], [0], [0], [1], [0, 0, 1, 1], [], []>} : vector<16x8xbf16>, vector<8x16xbf16>, vector<16x16xf32> -> vector<16x16xf32>
    %c0_8 = arith.constant 0 : index
    %c0_9 = arith.constant 0 : index
    %c0_10 = arith.constant 0 : index
    %c0_11 = arith.constant 0 : index
    %7 = vector.load %arg5[%c0_8, %c0_9, %c0_10, %c0_11] : memref<1x1x16x16xf32, #tpu.memory_space<vmem>>, vector<1x1x16x16xf32>
    %8 = vector.shape_cast %7 : vector<1x1x16x16xf32> to vector<16x16xf32>
    %9 = vector.shape_cast %6 : vector<16x16xf32> to vector<1x1x16x16xf32>
    tpu.vector_store %arg5[%c0_8, %c0_9, %c0_10, %c0_11], %9 {strides = array<i32>} : memref<1x1x16x16xf32, #tpu.memory_space<vmem>>, vector<1x1x16x16xf32>,
    return
  }
  func.func @transform_0(%arg0: i32, %arg1: i32) -> (i32, i32) {
    %c0_i32 = arith.constant 0 : i32
    %c0_i32_0 = arith.constant 0 : i32
    %c0_i32_1 = arith.constant 0 : i32
    return %c0_i32, %c0_i32_0 : i32, i32
  }
  func.func @transform_1(%arg0: i32, %arg1: i32) -> (i32, i32) {
    %c0_i32 = arith.constant 0 : i32
    %c0_i32_0 = arith.constant 0 : i32
    %c0_i32_1 = arith.constant 0 : i32
    return %c0_i32, %c0_i32_0 : i32, i32
  }
  func.func @transform_2(%arg0: i32, %arg1: i32) -> (i32, i32, i32, i32) {
    %c0_i32 = arith.constant 0 : i32
    %c0_i32_0 = arith.constant 0 : i32
    %c0_i32_1 = arith.constant 0 : i32
    return %arg0, %arg1, %c0_i32, %c0_i32_0 : i32, i32, i32, i32
  }
  func.func @transform_3(%arg0: i32, %arg1: i32) -> (i32, i32, i32, i32) {
    %c0_i32 = arith.constant 0 : i32
    %c0_i32_0 = arith.constant 0 : i32
    %c0_i32_1 = arith.constant 0 : i32
    return %arg0, %arg1, %c0_i32, %c0_i32_0 : i32, i32, i32, i32
  }
}

module attributes {stable_mosaic.version = 11 : i64} {
  func.func @_fused_stack_kernel(%arg0: i32, %arg1: memref<1x4x9x9x4xbf16, #tpu.memory_space<vmem>>, %arg2: memref<9x4x8xbf16, #tpu.memory_space<vmem>>, %arg3: memref<1x8xf32, #tpu.memory_space<vmem>>, %arg4: memref<8x16xbf16, #tpu.memory_space<vmem>>, %arg5: memref<1x16xf32, #tpu.memory_space<vmem>>, %arg6: memref<16x5xbf16, #tpu.memory_space<vmem>>, %arg7: memref<1x5xf32, #tpu.memory_space<vmem>>, %arg8: memref<1x8x8x5xf32, #tpu.memory_space<vmem>>) attributes {dimension_semantics = [#tpu.dimension_semantics<parallel>], iteration_bounds = array<i64: 2>, scalar_prefetch = 0 : i64, scratch_operands = 0 : i64, tpu.core_type = #tpu.core_type<tc>, window_params = [{transform_indices = @transform_0, window_bounds = array<i64: 1, 4, 9, 9, 4>}, {pipeline_mode = #tpu.pipeline_mode<synchronous>, transform_indices = @transform_1, window_bounds = array<i64: 9, 4, 8>}, {pipeline_mode = #tpu.pipeline_mode<synchronous>, transform_indices = @transform_2, window_bounds = array<i64: 1, 8>}, {pipeline_mode = #tpu.pipeline_mode<synchronous>, transform_indices = @transform_3, window_bounds = array<i64: 8, 16>}, {pipeline_mode = #tpu.pipeline_mode<synchronous>, transform_indices = @transform_4, window_bounds = array<i64: 1, 16>}, {pipeline_mode = #tpu.pipeline_mode<synchronous>, transform_indices = @transform_5, window_bounds = array<i64: 16, 5>}, {pipeline_mode = #tpu.pipeline_mode<synchronous>, transform_indices = @transform_6, window_bounds = array<i64: 1, 5>}, {transform_indices = @transform_7, window_bounds = array<i64: 1, 8, 8, 5>}]} {
    %c0 = arith.constant 0 : index
    %c0_0 = arith.constant 0 : index
    %c0_1 = arith.constant 0 : index
    %c0_2 = arith.constant 0 : index
    %c0_3 = arith.constant 0 : index
    %0 = vector.load %arg1[%c0, %c0_0, %c0_1, %c0_2, %c0_3] : memref<1x4x9x9x4xbf16, #tpu.memory_space<vmem>>, vector<1x1x9x9x4xbf16>
    %1 = vector.shape_cast %0 : vector<1x1x9x9x4xbf16> to vector<9x9x4xbf16>
    %c0_4 = arith.constant 0 : index
    %c1 = arith.constant 1 : index
    %c0_5 = arith.constant 0 : index
    %c0_6 = arith.constant 0 : index
    %c0_7 = arith.constant 0 : index
    %2 = vector.load %arg1[%c0_4, %c1, %c0_5, %c0_6, %c0_7] : memref<1x4x9x9x4xbf16, #tpu.memory_space<vmem>>, vector<1x1x9x9x4xbf16>
    %3 = vector.shape_cast %2 : vector<1x1x9x9x4xbf16> to vector<9x9x4xbf16>
    %c0_8 = arith.constant 0 : index
    %c2 = arith.constant 2 : index
    %c0_9 = arith.constant 0 : index
    %c0_10 = arith.constant 0 : index
    %c0_11 = arith.constant 0 : index
    %4 = vector.load %arg1[%c0_8, %c2, %c0_9, %c0_10, %c0_11] : memref<1x4x9x9x4xbf16, #tpu.memory_space<vmem>>, vector<1x1x9x9x4xbf16>
    %5 = vector.shape_cast %4 : vector<1x1x9x9x4xbf16> to vector<9x9x4xbf16>
    %c0_12 = arith.constant 0 : index
    %c3 = arith.constant 3 : index
    %c0_13 = arith.constant 0 : index
    %c0_14 = arith.constant 0 : index
    %c0_15 = arith.constant 0 : index
    %6 = vector.load %arg1[%c0_12, %c3, %c0_13, %c0_14, %c0_15] : memref<1x4x9x9x4xbf16, #tpu.memory_space<vmem>>, vector<1x1x9x9x4xbf16>
    %7 = vector.shape_cast %6 : vector<1x1x9x9x4xbf16> to vector<9x9x4xbf16>
    %cst = arith.constant 0.000000e+00 : f32
    %8 = vector.broadcast %cst : f32 to vector<64x8xf32>
    %9 = vector.extract_strided_slice %1 {offsets = [0, 0, 0], sizes = [8, 8, 4], strides = [1, 1, 1]} : vector<9x9x4xbf16> to vector<8x8x4xbf16>
    %10 = vector.shape_cast %9 : vector<8x8x4xbf16> to vector<64x4xbf16>
    %c0_16 = arith.constant 0 : index
    %c0_17 = arith.constant 0 : index
    %c0_18 = arith.constant 0 : index
    %11 = vector.load %arg2[%c0_16, %c0_17, %c0_18] : memref<9x4x8xbf16, #tpu.memory_space<vmem>>, vector<1x4x8xbf16>
    %12 = vector.shape_cast %11 : vector<1x4x8xbf16> to vector<4x8xbf16>
    %cst_19 = arith.constant dense<0.000000e+00> : vector<64x8xf32>
    %13 = tpu.matmul %10, %12, %cst_19 {dimension_numbers = #tpu.dot_dimension_numbers<[1], [0], [0], [1], [0, 0, 1, 1], [], []>} : vector<64x4xbf16>, vector<4x8xbf16>, vector<64x8xf32> -> vector<64x8xf32>
    %14 = arith.addf %8, %13 : vector<64x8xf32>
    %15 = vector.extract_strided_slice %3 {offsets = [0, 0, 0], sizes = [8, 8, 4], strides = [1, 1, 1]} : vector<9x9x4xbf16> to vector<8x8x4xbf16>
    %16 = vector.shape_cast %15 : vector<8x8x4xbf16> to vector<64x4xbf16>
    %c1_20 = arith.constant 1 : index
    %c0_21 = arith.constant 0 : index
    %c0_22 = arith.constant 0 : index
    %17 = vector.load %arg2[%c1_20, %c0_21, %c0_22] : memref<9x4x8xbf16, #tpu.memory_space<vmem>>, vector<1x4x8xbf16>
    %18 = vector.shape_cast %17 : vector<1x4x8xbf16> to vector<4x8xbf16>
    %cst_23 = arith.constant dense<0.000000e+00> : vector<64x8xf32>
    %19 = tpu.matmul %16, %18, %cst_23 {dimension_numbers = #tpu.dot_dimension_numbers<[1], [0], [0], [1], [0, 0, 1, 1], [], []>} : vector<64x4xbf16>, vector<4x8xbf16>, vector<64x8xf32> -> vector<64x8xf32>
    %20 = arith.addf %14, %19 : vector<64x8xf32>
    %21 = vector.extract_strided_slice %1 {offsets = [0, 1, 0], sizes = [8, 8, 4], strides = [1, 1, 1]} : vector<9x9x4xbf16> to vector<8x8x4xbf16>
    %22 = vector.shape_cast %21 : vector<8x8x4xbf16> to vector<64x4xbf16>
    %c2_24 = arith.constant 2 : index
    %c0_25 = arith.constant 0 : index
    %c0_26 = arith.constant 0 : index
    %23 = vector.load %arg2[%c2_24, %c0_25, %c0_26] : memref<9x4x8xbf16, #tpu.memory_space<vmem>>, vector<1x4x8xbf16>
    %24 = vector.shape_cast %23 : vector<1x4x8xbf16> to vector<4x8xbf16>
    %cst_27 = arith.constant dense<0.000000e+00> : vector<64x8xf32>
    %25 = tpu.matmul %22, %24, %cst_27 {dimension_numbers = #tpu.dot_dimension_numbers<[1], [0], [0], [1], [0, 0, 1, 1], [], []>} : vector<64x4xbf16>, vector<4x8xbf16>, vector<64x8xf32> -> vector<64x8xf32>
    %26 = arith.addf %20, %25 : vector<64x8xf32>
    %27 = vector.extract_strided_slice %5 {offsets = [0, 0, 0], sizes = [8, 8, 4], strides = [1, 1, 1]} : vector<9x9x4xbf16> to vector<8x8x4xbf16>
    %28 = vector.shape_cast %27 : vector<8x8x4xbf16> to vector<64x4xbf16>
    %c3_28 = arith.constant 3 : index
    %c0_29 = arith.constant 0 : index
    %c0_30 = arith.constant 0 : index
    %29 = vector.load %arg2[%c3_28, %c0_29, %c0_30] : memref<9x4x8xbf16, #tpu.memory_space<vmem>>, vector<1x4x8xbf16>
    %30 = vector.shape_cast %29 : vector<1x4x8xbf16> to vector<4x8xbf16>
    %cst_31 = arith.constant dense<0.000000e+00> : vector<64x8xf32>
    %31 = tpu.matmul %28, %30, %cst_31 {dimension_numbers = #tpu.dot_dimension_numbers<[1], [0], [0], [1], [0, 0, 1, 1], [], []>} : vector<64x4xbf16>, vector<4x8xbf16>, vector<64x8xf32> -> vector<64x8xf32>
    %32 = arith.addf %26, %31 : vector<64x8xf32>
    %33 = vector.extract_strided_slice %7 {offsets = [0, 0, 0], sizes = [8, 8, 4], strides = [1, 1, 1]} : vector<9x9x4xbf16> to vector<8x8x4xbf16>
    %34 = vector.shape_cast %33 : vector<8x8x4xbf16> to vector<64x4xbf16>
    %c4 = arith.constant 4 : index
    %c0_32 = arith.constant 0 : index
    %c0_33 = arith.constant 0 : index
    %35 = vector.load %arg2[%c4, %c0_32, %c0_33] : memref<9x4x8xbf16, #tpu.memory_space<vmem>>, vector<1x4x8xbf16>
    %36 = vector.shape_cast %35 : vector<1x4x8xbf16> to vector<4x8xbf16>
    %cst_34 = arith.constant dense<0.000000e+00> : vector<64x8xf32>
    %37 = tpu.matmul %34, %36, %cst_34 {dimension_numbers = #tpu.dot_dimension_numbers<[1], [0], [0], [1], [0, 0, 1, 1], [], []>} : vector<64x4xbf16>, vector<4x8xbf16>, vector<64x8xf32> -> vector<64x8xf32>
    %38 = arith.addf %32, %37 : vector<64x8xf32>
    %39 = vector.extract_strided_slice %5 {offsets = [0, 1, 0], sizes = [8, 8, 4], strides = [1, 1, 1]} : vector<9x9x4xbf16> to vector<8x8x4xbf16>
    %40 = vector.shape_cast %39 : vector<8x8x4xbf16> to vector<64x4xbf16>
    %c5 = arith.constant 5 : index
    %c0_35 = arith.constant 0 : index
    %c0_36 = arith.constant 0 : index
    %41 = vector.load %arg2[%c5, %c0_35, %c0_36] : memref<9x4x8xbf16, #tpu.memory_space<vmem>>, vector<1x4x8xbf16>
    %42 = vector.shape_cast %41 : vector<1x4x8xbf16> to vector<4x8xbf16>
    %cst_37 = arith.constant dense<0.000000e+00> : vector<64x8xf32>
    %43 = tpu.matmul %40, %42, %cst_37 {dimension_numbers = #tpu.dot_dimension_numbers<[1], [0], [0], [1], [0, 0, 1, 1], [], []>} : vector<64x4xbf16>, vector<4x8xbf16>, vector<64x8xf32> -> vector<64x8xf32>
    %44 = arith.addf %38, %43 : vector<64x8xf32>
    %45 = vector.extract_strided_slice %1 {offsets = [1, 0, 0], sizes = [8, 8, 4], strides = [1, 1, 1]} : vector<9x9x4xbf16> to vector<8x8x4xbf16>
    %46 = vector.shape_cast %45 : vector<8x8x4xbf16> to vector<64x4xbf16>
    %c6 = arith.constant 6 : index
    %c0_38 = arith.constant 0 : index
    %c0_39 = arith.constant 0 : index
    %47 = vector.load %arg2[%c6, %c0_38, %c0_39] : memref<9x4x8xbf16, #tpu.memory_space<vmem>>, vector<1x4x8xbf16>
    %48 = vector.shape_cast %47 : vector<1x4x8xbf16> to vector<4x8xbf16>
    %cst_40 = arith.constant dense<0.000000e+00> : vector<64x8xf32>
    %49 = tpu.matmul %46, %48, %cst_40 {dimension_numbers = #tpu.dot_dimension_numbers<[1], [0], [0], [1], [0, 0, 1, 1], [], []>} : vector<64x4xbf16>, vector<4x8xbf16>, vector<64x8xf32> -> vector<64x8xf32>
    %50 = arith.addf %44, %49 : vector<64x8xf32>
    %51 = vector.extract_strided_slice %3 {offsets = [1, 0, 0], sizes = [8, 8, 4], strides = [1, 1, 1]} : vector<9x9x4xbf16> to vector<8x8x4xbf16>
    %52 = vector.shape_cast %51 : vector<8x8x4xbf16> to vector<64x4xbf16>
    %c7 = arith.constant 7 : index
    %c0_41 = arith.constant 0 : index
    %c0_42 = arith.constant 0 : index
    %53 = vector.load %arg2[%c7, %c0_41, %c0_42] : memref<9x4x8xbf16, #tpu.memory_space<vmem>>, vector<1x4x8xbf16>
    %54 = vector.shape_cast %53 : vector<1x4x8xbf16> to vector<4x8xbf16>
    %cst_43 = arith.constant dense<0.000000e+00> : vector<64x8xf32>
    %55 = tpu.matmul %52, %54, %cst_43 {dimension_numbers = #tpu.dot_dimension_numbers<[1], [0], [0], [1], [0, 0, 1, 1], [], []>} : vector<64x4xbf16>, vector<4x8xbf16>, vector<64x8xf32> -> vector<64x8xf32>
    %56 = arith.addf %50, %55 : vector<64x8xf32>
    %57 = vector.extract_strided_slice %1 {offsets = [1, 1, 0], sizes = [8, 8, 4], strides = [1, 1, 1]} : vector<9x9x4xbf16> to vector<8x8x4xbf16>
    %58 = vector.shape_cast %57 : vector<8x8x4xbf16> to vector<64x4xbf16>
    %c8 = arith.constant 8 : index
    %c0_44 = arith.constant 0 : index
    %c0_45 = arith.constant 0 : index
    %59 = vector.load %arg2[%c8, %c0_44, %c0_45] : memref<9x4x8xbf16, #tpu.memory_space<vmem>>, vector<1x4x8xbf16>
    %60 = vector.shape_cast %59 : vector<1x4x8xbf16> to vector<4x8xbf16>
    %cst_46 = arith.constant dense<0.000000e+00> : vector<64x8xf32>
    %61 = tpu.matmul %58, %60, %cst_46 {dimension_numbers = #tpu.dot_dimension_numbers<[1], [0], [0], [1], [0, 0, 1, 1], [], []>} : vector<64x4xbf16>, vector<4x8xbf16>, vector<64x8xf32> -> vector<64x8xf32>
    %62 = arith.addf %56, %61 : vector<64x8xf32>
    %c0_47 = arith.constant 0 : index
    %c0_48 = arith.constant 0 : index
    %63 = vector.load %arg3[%c0_47, %c0_48] : memref<1x8xf32, #tpu.memory_space<vmem>>, vector<1x8xf32>
    %64 = vector.broadcast %63 : vector<1x8xf32> to vector<64x8xf32>
    %65 = arith.addf %62, %64 : vector<64x8xf32>
    %cst_49 = arith.constant 0.000000e+00 : f32
    %66 = vector.broadcast %cst_49 : f32 to vector<64x8xf32>
    %67 = arith.maximumf %65, %66 : vector<64x8xf32>
    %68 = arith.truncf %67 : vector<64x8xf32> to vector<64x8xbf16>
    %c0_50 = arith.constant 0 : index
    %c0_51 = arith.constant 0 : index
    %69 = vector.load %arg4[%c0_50, %c0_51] : memref<8x16xbf16, #tpu.memory_space<vmem>>, vector<8x16xbf16>
    %cst_52 = arith.constant dense<0.000000e+00> : vector<64x16xf32>
    %70 = tpu.matmul %68, %69, %cst_52 {dimension_numbers = #tpu.dot_dimension_numbers<[1], [0], [0], [1], [0, 0, 1, 1], [], []>} : vector<64x8xbf16>, vector<8x16xbf16>, vector<64x16xf32> -> vector<64x16xf32>
    %c0_53 = arith.constant 0 : index
    %c0_54 = arith.constant 0 : index
    %71 = vector.load %arg5[%c0_53, %c0_54] : memref<1x16xf32, #tpu.memory_space<vmem>>, vector<1x16xf32>
    %72 = vector.broadcast %71 : vector<1x16xf32> to vector<64x16xf32>
    %73 = arith.addf %70, %72 : vector<64x16xf32>
    %cst_55 = arith.constant 0.000000e+00 : f32
    %74 = vector.broadcast %cst_55 : f32 to vector<64x16xf32>
    %75 = arith.maximumf %73, %74 : vector<64x16xf32>
    %76 = arith.truncf %75 : vector<64x16xf32> to vector<64x16xbf16>
    %c0_56 = arith.constant 0 : index
    %c0_57 = arith.constant 0 : index
    %77 = vector.load %arg6[%c0_56, %c0_57] : memref<16x5xbf16, #tpu.memory_space<vmem>>, vector<16x5xbf16>
    %cst_58 = arith.constant dense<0.000000e+00> : vector<64x5xf32>
    %78 = tpu.matmul %76, %77, %cst_58 {dimension_numbers = #tpu.dot_dimension_numbers<[1], [0], [0], [1], [0, 0, 1, 1], [], []>} : vector<64x16xbf16>, vector<16x5xbf16>, vector<64x5xf32> -> vector<64x5xf32>
    %c0_59 = arith.constant 0 : index
    %c0_60 = arith.constant 0 : index
    %79 = vector.load %arg7[%c0_59, %c0_60] : memref<1x5xf32, #tpu.memory_space<vmem>>, vector<1x5xf32>
    %80 = vector.broadcast %79 : vector<1x5xf32> to vector<64x5xf32>
    %81 = arith.addf %78, %80 : vector<64x5xf32>
    %82 = vector.shape_cast %81 : vector<64x5xf32> to vector<8x8x5xf32>
    %c0_61 = arith.constant 0 : index
    %c0_62 = arith.constant 0 : index
    %c0_63 = arith.constant 0 : index
    %c0_64 = arith.constant 0 : index
    %83 = vector.load %arg8[%c0_61, %c0_62, %c0_63, %c0_64] : memref<1x8x8x5xf32, #tpu.memory_space<vmem>>, vector<1x8x8x5xf32>
    %84 = vector.shape_cast %83 : vector<1x8x8x5xf32> to vector<8x8x5xf32>
    %85 = vector.shape_cast %82 : vector<8x8x5xf32> to vector<1x8x8x5xf32>
    tpu.vector_store %arg8[%c0_61, %c0_62, %c0_63, %c0_64], %85 {strides = array<i32>} : memref<1x8x8x5xf32, #tpu.memory_space<vmem>>, vector<1x8x8x5xf32>,
    return
  }
  func.func @transform_0(%arg0: i32) -> (i32, i32, i32, i32, i32) {
    %c0_i32 = arith.constant 0 : i32
    %c0_i32_0 = arith.constant 0 : i32
    %c0_i32_1 = arith.constant 0 : i32
    %c0_i32_2 = arith.constant 0 : i32
    %c0_i32_3 = arith.constant 0 : i32
    return %arg0, %c0_i32, %c0_i32_0, %c0_i32_1, %c0_i32_2 : i32, i32, i32, i32, i32
  }
  func.func @transform_1(%arg0: i32) -> (i32, i32, i32) {
    %c0_i32 = arith.constant 0 : i32
    %c0_i32_0 = arith.constant 0 : i32
    %c0_i32_1 = arith.constant 0 : i32
    %c0_i32_2 = arith.constant 0 : i32
    return %c0_i32, %c0_i32_0, %c0_i32_1 : i32, i32, i32
  }
  func.func @transform_2(%arg0: i32) -> (i32, i32) {
    %c0_i32 = arith.constant 0 : i32
    %c0_i32_0 = arith.constant 0 : i32
    %c0_i32_1 = arith.constant 0 : i32
    return %c0_i32, %c0_i32_0 : i32, i32
  }
  func.func @transform_3(%arg0: i32) -> (i32, i32) {
    %c0_i32 = arith.constant 0 : i32
    %c0_i32_0 = arith.constant 0 : i32
    %c0_i32_1 = arith.constant 0 : i32
    return %c0_i32, %c0_i32_0 : i32, i32
  }
  func.func @transform_4(%arg0: i32) -> (i32, i32) {
    %c0_i32 = arith.constant 0 : i32
    %c0_i32_0 = arith.constant 0 : i32
    %c0_i32_1 = arith.constant 0 : i32
    return %c0_i32, %c0_i32_0 : i32, i32
  }
  func.func @transform_5(%arg0: i32) -> (i32, i32) {
    %c0_i32 = arith.constant 0 : i32
    %c0_i32_0 = arith.constant 0 : i32
    %c0_i32_1 = arith.constant 0 : i32
    return %c0_i32, %c0_i32_0 : i32, i32
  }
  func.func @transform_6(%arg0: i32) -> (i32, i32) {
    %c0_i32 = arith.constant 0 : i32
    %c0_i32_0 = arith.constant 0 : i32
    %c0_i32_1 = arith.constant 0 : i32
    return %c0_i32, %c0_i32_0 : i32, i32
  }
  func.func @transform_7(%arg0: i32) -> (i32, i32, i32, i32) {
    %c0_i32 = arith.constant 0 : i32
    %c0_i32_0 = arith.constant 0 : i32
    %c0_i32_1 = arith.constant 0 : i32
    %c0_i32_2 = arith.constant 0 : i32
    return %arg0, %c0_i32, %c0_i32_0, %c0_i32_1 : i32, i32, i32, i32
  }
}

</mosaic_0001>

<llo_original>
// kernel: complete_network_forward.3
$region0: #{complete_network_forward.3}
  #allocation0 [shape = 'u32[]', space=smem, size = 0x4, offset = 0x4, fixed_abs, tag = 'smem constant byte address 0x4 - core index']
  #allocation1 [shape = 'u32[72,128]{1,0:T(1,128)}', space=vmem, size = 0x9000, scoped, tag = 'internal scratch']
  %s0 = inlined_call_operand.vmem [shape: bf16[16,8], index: 0, kind: input, shape index: {}]
  %s1 = inlined_call_operand.vmem [shape: bf16[8,16], index: 1, kind: input, shape index: {}]
  %s2 = inlined_call_operand.vmem [shape: bf16[2,5,8,8], index: 2, kind: input, shape index: {}]
  %s3 = inlined_call_operand.hbm [shape: f32[2,5,16,16], index: 3, kind: output, shape index: {}]
  %s4 = sld [smem:[#allocation0]]
  $region45: #{complete_network_forward.3} parent=0
    _
  %s6 = ssub.s32 1, %s4
  %s7 = scalar_select 0, %s6, %s4
  $region1: #{complete_network_forward.3} parent=0
    #allocation2 [shape = 'u8[16384]{0}', space=vmem, size = 0x4000, scoped, tag = 'output window, operand 0']
    #allocation3 [shape = 's32[2]{0}', space=sflag, size = 0x8, scoped, tag = 'scoped memory for complete_network_forward.3']
    %8 = vsyncpa [#allocation3], 0
    %s9 = scalar_lea.sflag [#allocation3], 1
    %10 = vsyncpa %s9, 0
    loop: start=0, step=1, limit=12
    $region2: #{complete_network_forward.3} parent=1 // loop_pre_header
      _
    $region3: #{complete_network_forward.3} parent=1 // loop_header
      %s12 = sphi 0, %s16
      %p13 = scmp.ge.s32.totalorder %s12, 12
      %s19 = sphi 0, %s31
      %s20 = sphi 0, %s27
      %s21 = sphi 0, %s19
      %s22 = sphi 0, %s20
      %s23 = sphi 0, %s21
      %s24 = sphi 0, %s22
      %s32 = sphi 0, %s32
      %s34 = sphi 0, %s32
      %s35 = sphi 0, %s34
      %s49 = sphi 0, %s35
      %s53 = sphi 0, %s53
      %s55 = sphi 0, %s53
      %s56 = sphi 0, %s55
      %s70 = sphi 0, %s56
      %s78 = sphi 0, %s80
      %s81 = sphi 0, %s78
      %s82 = sphi 0, %s81
      %s98 = sphi 0, %s82
      %s106 = sphi 0, %s108
      %s109 = sphi 0, %s106
      %s110 = sphi 0, %s109
      %s126 = sphi 0, %s110
    $region4: #{complete_network_forward.3} parent=1 // loop_header_branch
      %15 = sbr.rel (%p13) target = $region8
    $region5: #{complete_network_forward.3} parent=1 // loop_body
      %s17 = ssub.s32 %s12, 1
      %s18 = ssub.s32 %s12, 2
      %s25 = sadd.s32 1, %s20
      %p26 = scmp.ge.s32.totalorder %s25, 5
      %s27 = scalar_select %p26, 0, %s25
      %s28 = sadd.s32 1, %s19
      %s29 = scalar_select %p26, %s28, %s19
      %p30 = scmp.ge.s32.totalorder %s29, 2
      %s31 = scalar_select %p30, 0, %s29
      %s33 = sadd.s32 %s32, 1
      %p36 = scmp.eq.s32.totalorder %s12, 9
      %p37 = scmp.ne.s32.totalorder %s32, %s34
      %p38 = scmp.eq.s32.totalorder %s12, 0
      %p39 = por %p37, %p38
      %p40 = scmp.ne.s32.totalorder %s32, %s34
      %p41 = scmp.eq.s32.totalorder %s17, 9
      %p42 = por %p40, %p41
      %p43 = scmp.ne.s32.totalorder %s34, %s35
      %p44 = scmp.eq.s32.totalorder %s17, 0
      %p45 = por %p43, %p44
      %p46 = scmp.ne.s32.totalorder %s34, %s35
      %p47 = scmp.eq.s32.totalorder %s18, 9
      %p48 = por %p46, %p47
      %p50 = scmp.ne.s32.totalorder %s35, %s49
      %p51 = scmp.eq.s32.totalorder %s18, 0
      %p52 = por %p50, %p51
      %s54 = sadd.s32 %s53, 1
      %p57 = scmp.eq.s32.totalorder %s12, 9
      %p58 = scmp.ne.s32.totalorder %s53, %s55
      %p59 = scmp.eq.s32.totalorder %s12, 0
      %p60 = por %p58, %p59
      %p61 = scmp.ne.s32.totalorder %s53, %s55
      %p62 = scmp.eq.s32.totalorder %s17, 9
      %p63 = por %p61, %p62
      %p64 = scmp.ne.s32.totalorder %s55, %s56
      %p65 = scmp.eq.s32.totalorder %s17, 0
      %p66 = por %p64, %p65
      %p67 = scmp.ne.s32.totalorder %s55, %s56
      %p68 = scmp.eq.s32.totalorder %s18, 9
      %p69 = por %p67, %p68
      %p71 = scmp.ne.s32.totalorder %s56, %s70
      %p72 = scmp.eq.s32.totalorder %s18, 0
      %p73 = por %p71, %p72
      %s74 = ssub.s32 %s19, %s31
      %s75 = ssub.s32 %s20, %s27
      %s76 = sor.u32 %s74, %s75
      %p77 = scmp.eq.s32.totalorder %s76, 0
      %s79 = sadd.s32 %s78, 1
      %s80 = scalar_select %p77, %s78, %s79
      %p83 = pneg %p77
      %p84 = scmp.eq.s32.totalorder %s12, 9
      %p85 = por %p83, %p84
      %p86 = scmp.ne.s32.totalorder %s78, %s81
      %p87 = scmp.eq.s32.totalorder %s12, 0
      %p88 = por %p86, %p87
      %p89 = scmp.ne.s32.totalorder %s78, %s81
      %p90 = scmp.eq.s32.totalorder %s17, 9
      %p91 = por %p89, %p90
      %p92 = scmp.ne.s32.totalorder %s81, %s82
      %p93 = scmp.eq.s32.totalorder %s17, 0
      %p94 = por %p92, %p93
      %p95 = scmp.ne.s32.totalorder %s81, %s82
      %p96 = scmp.eq.s32.totalorder %s18, 9
      %p97 = por %p95, %p96
      %p99 = scmp.ne.s32.totalorder %s82, %s98
      %p100 = scmp.eq.s32.totalorder %s18, 0
      %p101 = por %p99, %p100
      %s102 = ssub.s32 %s19, %s31
      %s103 = ssub.s32 %s20, %s27
      %s104 = sor.u32 %s102, %s103
      %p105 = scmp.eq.s32.totalorder %s104, 0
      %s107 = sadd.s32 %s106, 1
      %s108 = scalar_select %p105, %s106, %s107
      %p111 = pneg %p105
      %p112 = scmp.eq.s32.totalorder %s12, 9
      %p113 = por %p111, %p112
      %p114 = scmp.ne.s32.totalorder %s106, %s109
      %p115 = scmp.eq.s32.totalorder %s12, 0
      %p116 = por %p114, %p115
      %p117 = scmp.ne.s32.totalorder %s106, %s109
      %p118 = scmp.eq.s32.totalorder %s17, 9
      %p119 = por %p117, %p118
      %p120 = scmp.ne.s32.totalorder %s109, %s110
      %p121 = scmp.eq.s32.totalorder %s17, 0
      %p122 = por %p120, %p121
      %p123 = scmp.ne.s32.totalorder %s109, %s110
      %p124 = scmp.eq.s32.totalorder %s18, 9
      %p125 = por %p123, %p124
      %p127 = scmp.ne.s32.totalorder %s110, %s126
      %p128 = scmp.eq.s32.totalorder %s18, 0
      %p129 = por %p127, %p128
      %p130 = scmp.le.s32.totalorder 1, %s12
      %p131 = scmp.lt.s32.totalorder %s12, 11
      %p132 = pnand %p130, %p131
      %p133 = pneg %p132
      // Predicated region
      $region9: #{complete_network_forward.3} parent=5 // pred_check
        _
      $region10: #{complete_network_forward.3} parent=5 // pred_check_branch
        %135 = sbr.rel (%p132) target = $region12
      $region11: #{complete_network_forward.3} parent=5 // pred_region
        %s136 = ssub.s32 %s12, 1
        // Predicated region
        $region13: #{complete_network_forward.3} parent=11 // pred_check
          %p137 = pneg %p45
        $region14: #{complete_network_forward.3} parent=11 // pred_check_branch
          %139 = sbr.rel (%p137) target = $region16
        $region15: #{complete_network_forward.3} parent=11 // pred_region
          _
        $region16: #{complete_network_forward.3} parent=11 // pred_fallthru
          _
        // Predicated region
        $region17: #{complete_network_forward.3} parent=11 // pred_check
          %p140 = pneg %p66
        $region18: #{complete_network_forward.3} parent=11 // pred_check_branch
          %142 = sbr.rel (%p140) target = $region20
        $region19: #{complete_network_forward.3} parent=11 // pred_region
          _
        $region20: #{complete_network_forward.3} parent=11 // pred_fallthru
          _
      $region12: #{complete_network_forward.3} parent=5 // pred_fallthru
        _
      %p143 = scmp.lt.s32.totalorder %s12, 10
      // Predicated region
      $region21: #{complete_network_forward.3} parent=5 // pred_check
        %p144 = pneg %p143
      $region22: #{complete_network_forward.3} parent=5 // pred_check_branch
        %146 = sbr.rel (%p144) target = $region24
      $region23: #{complete_network_forward.3} parent=5 // pred_region
        // Predicated region
        $region25: #{complete_network_forward.3} parent=23 // pred_check
          %p147 = pneg %p88
        $region26: #{complete_network_forward.3} parent=23 // pred_check_branch
          %149 = sbr.rel (%p147) target = $region28
        $region27: #{complete_network_forward.3} parent=23 // pred_region
          %p150 = scmp.lt.s32.totalorder %s19, 1
          %s151 = scalar_select %p150, %s19, 1
          %p152 = scmp.lt.s32.totalorder %s20, 4
          %s153 = scalar_select %p152, %s20, 4
          %s154 = smul.addr %s151, 5
          %s155 = sadd.s32 %s153, %s154
          %s156 = smul.addr %s155, 4
          %s157 = scalar_lea.vmem %s2, %s156
        $region28: #{complete_network_forward.3} parent=23 // pred_fallthru
          _
      $region24: #{complete_network_forward.3} parent=5 // pred_fallthru
        _
      %p158 = scmp.le.s32.totalorder 1, %s12
      %p159 = scmp.lt.s32.totalorder %s12, 11
      %p160 = pnand %p158, %p159
      %p161 = pneg %p160
      // Predicated region
      $region29: #{complete_network_forward.3} parent=5 // pred_check
        _
      $region30: #{complete_network_forward.3} parent=5 // pred_check_branch
        %163 = sbr.rel (%p160) target = $region32
      $region31: #{complete_network_forward.3} parent=5 // pred_region
        %s164 = ssub.s32 %s12, 1
        %p165 = pneg %p45
        %p166 = pneg %p42
        %p167 = pneg %p66
        %p168 = pneg %p63
        %p169 = scmp.lt.s32.totalorder %s21, 1
        %s170 = scalar_select %p169, %s21, 1
        %p171 = scmp.lt.s32.totalorder %s22, 4
        %s172 = scalar_select %p171, %s22, 4
        %s173 = smul.addr %s170, 5
        %s174 = sadd.s32 %s172, %s173
        %s175 = smul.addr %s174, 4
        %s176 = scalar_lea.vmem %s2, %s175
        %p177 = pneg %p94
        %p178 = pneg %p91
        %p179 = pneg %p122
        %p180 = pneg %p119
        %s181 = sand.u32 %s109, 1
        %s182 = scalar_lea.sflag [#allocation3], %s181
        %s183 = sand.u32 %s109, 1
        %s184 = smul.addr %s183, 16
        %s185 = scalar_lea.vmem [#allocation2], %s184
        %p186 = scmp.lt.s32.totalorder %s21, 1
        %s187 = scalar_select %p186, %s21, 1
        %p188 = scmp.lt.s32.totalorder %s22, 4
        %s189 = scalar_select %p188, %s22, 4
        %s190 = smul.addr %s187, 5
        %s191 = sadd.s32 %s189, %s190
        %s192 = smul.addr %s191, 4
        %s193 = scalar_lea.vmem %s2, %s192
        %v195 = vld [vmem:[%s193] sm:$0xf]
        %v196 = vld [vmem:[%s0] sm:$0xf]
        %v197 = vld [vmem:[%s0 + $0x4] sm:$0xf]
        %v200 = vunpack.c.l.b16 %v196
        %v201 = vunpack.c.l.b16 %v197
        %v202 = vpack.c.b16 %v201, %v200
        %vm203 = vcmask 64512
        %v205 = vsel %vm203, %v202, 0
        %vm207 = vcmask 1043456
        %v209 = vsel %vm207, %v195, 0
        %211 = vmatpush.bf16.msra.mxu0 0
        %212 = vmatpush.bf16.msra.mxu0 0
        %213 = vmatpush.bf16.msra.mxu0 0
        %214 = vmatpush.bf16.msra.mxu0 0
        %215 = vmatpush.bf16.msra.mxu0 0
        %216 = vmatpush.bf16.msra.mxu0 0
        %217 = vmatpush.bf16.msra.mxu0 0
        %218 = vmatpush.bf16.msra.mxu0 %v209
        %219 = vmatmul.bf16.gmra.mxu0 %v205
        %v220 = vpop.f32.mrf.mxu0
        %v221 = vadd.f32 0.0, %v220
        %v222 = vpop.f32.mrf.mxu0
        %v223 = vadd.f32 0.0, %v222
        %224 = vdwg.mxu0
        %v225 = vpack.c.bf16 %v223, %v221
        %v226 = vld [vmem:[%s1] sm:$0xf]
        %v228 = vsel %vm203, %v225, 0
        %v231 = vsel %vm207, %v226, 0
        %233 = vmatpush.bf16.msra.mxu0 0
        %234 = vmatpush.bf16.msra.mxu0 0
        %235 = vmatpush.bf16.msra.mxu0 0
        %236 = vmatpush.bf16.msra.mxu0 0
        %237 = vmatpush.bf16.msra.mxu0 0
        %238 = vmatpush.bf16.msra.mxu0 0
        %239 = vmatpush.bf16.msra.mxu0 0
        %240 = vmatpush.bf16.msra.mxu0 %v231
        %241 = vmatmul.bf16.gmra.mxu0 %v228
        %v242 = vpop.f32.mrf.mxu0
        %v243 = vadd.f32 0.0, %v242
        %v244 = vpop.f32.mrf.mxu0
        %v245 = vadd.f32 0.0, %v244
        %246 = vdwg.mxu0
        %vm247 = vcmask 130048
        %248 = vst.msk [vmem:[%s185] sm:$0xff] %vm247, %v243
        %249 = vst.msk [vmem:[%s185 + $0x8] sm:$0xff] %vm247, %v245
        %s250 = sand.u32 %s109, 1
        %s251 = scalar_lea.sflag [#allocation3], %s250
        %s252 = sand.u32 %s109, 1
        %s253 = smul.addr %s252, 16
        %s254 = scalar_lea.vmem [#allocation2], %s253
        // Predicated region
        $region33: #{complete_network_forward.3} parent=31 // pred_check
          %p255 = pneg %p119
        $region34: #{complete_network_forward.3} parent=31 // pred_check_branch
          %257 = sbr.rel (%p255) target = $region36
        $region35: #{complete_network_forward.3} parent=31 // pred_region
          %259 = vsyncadd %s251, 0
          %s260 = smul.addr %s22, 2
          %s261 = smul.addr %s21, 10
          %s262 = sadd.s32 %s260, %s261
          %s263 = smul.addr %s262, 8
          %s264 = scalar_lea.hbm %s3, %s263
          %s265 = sshll.u32 %s254, 4
          %s266 = int_to_ptr.vmem [resolvable:$true] %s265
          %s267 = sshll.u32 %s264, 4
          %s268 = int_to_ptr.hbm [resolvable:$true] %s267
          %273 = dma.vmem_to_hbm [thread:$0]  %s266, 256, %s268, %s251, 128, 128, 8
        $region36: #{complete_network_forward.3} parent=31 // pred_fallthru
          _
      $region32: #{complete_network_forward.3} parent=5 // pred_fallthru
        _
      %p274 = scmp.le.s32.totalorder 2, %s12
      // Predicated region
      $region37: #{complete_network_forward.3} parent=5 // pred_check
        %p275 = pneg %p274
      $region38: #{complete_network_forward.3} parent=5 // pred_check_branch
        %277 = sbr.rel (%p275) target = $region40
      $region39: #{complete_network_forward.3} parent=5 // pred_region
        %s278 = ssub.s32 %s12, 2
        // Predicated region
        $region41: #{complete_network_forward.3} parent=39 // pred_check
          %p279 = pneg %p125
        $region42: #{complete_network_forward.3} parent=39 // pred_check_branch
          %281 = sbr.rel (%p279) target = $region44
        $region43: #{complete_network_forward.3} parent=39 // pred_region
          %s282 = sand.u32 %s110, 1
          %s283 = scalar_lea.sflag [#allocation3], %s282
          %s284 = sand.u32 %s110, 1
          %s285 = smul.addr %s284, 16
          %s286 = scalar_lea.vmem [#allocation2], %s285
          %288 = dma.done %s283, 256
        $region44: #{complete_network_forward.3} parent=39 // pred_fallthru
          _
      $region40: #{complete_network_forward.3} parent=5 // pred_fallthru
        _
    $region6: #{complete_network_forward.3} parent=1 // loop_footer
      %s16 = sadd.s32 1, %s12
    $region7: #{complete_network_forward.3} parent=1 // loop_footer_branch
      %11 = sbr.rel target = $region3
    $region8: #{complete_network_forward.3} parent=1 // loop_exit
      _
    %289 = vsyncpa [#allocation3], 1
    %s290 = scalar_lea.sflag [#allocation3], 1
    %291 = vsyncpa %s290, 1

// kernel: complete_network_forward.2
$region0: #{complete_network_forward.2}
  #allocation0 [shape = 'u32[]', space=smem, size = 0x4, offset = 0x4, fixed_abs, tag = 'smem constant byte address 0x4 - core index']
  #allocation1 [shape = 'u32[72,128]{1,0:T(1,128)}', space=vmem, size = 0x9000, scoped, tag = 'internal scratch']
  %s0 = inlined_call_operand.vmem [shape: bf16[2,4,9,9,4], index: 0, kind: input, shape index: {}]
  %s1 = inlined_call_operand.vmem [shape: bf16[9,4,8], index: 1, kind: input, shape index: {}]
  %s2 = inlined_call_operand.vmem [shape: f32[1,8], index: 2, kind: input, shape index: {}]
  %s3 = inlined_call_operand.vmem [shape: bf16[8,16], index: 3, kind: input, shape index: {}]
  %s4 = inlined_call_operand.vmem [shape: f32[1,16], index: 4, kind: input, shape index: {}]
  %s5 = inlined_call_operand.vmem [shape: bf16[16,5], index: 5, kind: input, shape index: {}]
  %s6 = inlined_call_operand.vmem [shape: f32[1,5], index: 6, kind: input, shape index: {}]
  %s7 = inlined_call_operand.vmem [shape: f32[2,8,8,5], index: 7, kind: output, shape index: {}]
  %s8 = sld [smem:[#allocation0]]
  $region61: #{complete_network_forward.2} parent=0
    _
  %s10 = ssub.s32 1, %s8
  %s11 = scalar_select 0, %s10, %s8
  loop: start=0, step=1, limit=4
  $region2: #{complete_network_forward.2} parent=0 // loop_pre_header
    _
  $region3: #{complete_network_forward.2} parent=0 // loop_header
    %s13 = sphi 0, %s17
    %p14 = scmp.ge.s32.totalorder %s13, 4
    %s23 = sphi 0, %s25
    %s26 = sphi 0, %s23
    %s27 = sphi 0, %s26
    %s43 = sphi 0, %s27
    %s47 = sphi 0, %s47
    %s49 = sphi 0, %s47
    %s50 = sphi 0, %s49
    %s64 = sphi 0, %s50
    %s68 = sphi 0, %s68
    %s70 = sphi 0, %s68
    %s71 = sphi 0, %s70
    %s85 = sphi 0, %s71
    %s89 = sphi 0, %s89
    %s91 = sphi 0, %s89
    %s92 = sphi 0, %s91
    %s106 = sphi 0, %s92
    %s110 = sphi 0, %s110
    %s112 = sphi 0, %s110
    %s113 = sphi 0, %s112
    %s127 = sphi 0, %s113
    %s131 = sphi 0, %s131
    %s133 = sphi 0, %s131
    %s134 = sphi 0, %s133
    %s148 = sphi 0, %s134
    %s152 = sphi 0, %s152
    %s154 = sphi 0, %s152
    %s155 = sphi 0, %s154
    %s169 = sphi 0, %s155
    %s175 = sphi 0, %s177
    %s178 = sphi 0, %s175
    %s179 = sphi 0, %s178
    %s195 = sphi 0, %s179
  $region4: #{complete_network_forward.2} parent=0 // loop_header_branch
    %16 = sbr.rel (%p14) target = $region8
  $region5: #{complete_network_forward.2} parent=0 // loop_body
    %s18 = ssub.s32 %s13, 1
    %s19 = ssub.s32 %s13, 2
    %s20 = sadd.s32 %s13, 1
    %s21 = ssub.s32 %s13, %s20
    %p22 = scmp.eq.s32.totalorder %s21, 0
    %s24 = sadd.s32 %s23, 1
    %s25 = scalar_select %p22, %s23, %s24
    %p28 = pneg %p22
    %p29 = scmp.eq.s32.totalorder %s13, 1
    %p30 = por %p28, %p29
    %p31 = scmp.ne.s32.totalorder %s23, %s26
    %p32 = scmp.eq.s32.totalorder %s13, 0
    %p33 = por %p31, %p32
    %p34 = scmp.ne.s32.totalorder %s23, %s26
    %p35 = scmp.eq.s32.totalorder %s18, 1
    %p36 = por %p34, %p35
    %p37 = scmp.ne.s32.totalorder %s26, %s27
    %p38 = scmp.eq.s32.totalorder %s18, 0
    %p39 = por %p37, %p38
    %p40 = scmp.ne.s32.totalorder %s26, %s27
    %p41 = scmp.eq.s32.totalorder %s19, 1
    %p42 = por %p40, %p41
    %p44 = scmp.ne.s32.totalorder %s27, %s43
    %p45 = scmp.eq.s32.totalorder %s19, 0
    %p46 = por %p44, %p45
    %s48 = sadd.s32 %s47, 1
    %p51 = scmp.eq.s32.totalorder %s13, 1
    %p52 = scmp.ne.s32.totalorder %s47, %s49
    %p53 = scmp.eq.s32.totalorder %s13, 0
    %p54 = por %p52, %p53
    %p55 = scmp.ne.s32.totalorder %s47, %s49
    %p56 = scmp.eq.s32.totalorder %s18, 1
    %p57 = por %p55, %p56
    %p58 = scmp.ne.s32.totalorder %s49, %s50
    %p59 = scmp.eq.s32.totalorder %s18, 0
    %p60 = por %p58, %p59
    %p61 = scmp.ne.s32.totalorder %s49, %s50
    %p62 = scmp.eq.s32.totalorder %s19, 1
    %p63 = por %p61, %p62
    %p65 = scmp.ne.s32.totalorder %s50, %s64
    %p66 = scmp.eq.s32.totalorder %s19, 0
    %p67 = por %p65, %p66
    %s69 = sadd.s32 %s68, 1
    %p72 = scmp.eq.s32.totalorder %s13, 1
    %p73 = scmp.ne.s32.totalorder %s68, %s70
    %p74 = scmp.eq.s32.totalorder %s13, 0
    %p75 = por %p73, %p74
    %p76 = scmp.ne.s32.totalorder %s68, %s70
    %p77 = scmp.eq.s32.totalorder %s18, 1
    %p78 = por %p76, %p77
    %p79 = scmp.ne.s32.totalorder %s70, %s71
    %p80 = scmp.eq.s32.totalorder %s18, 0
    %p81 = por %p79, %p80
    %p82 = scmp.ne.s32.totalorder %s70, %s71
    %p83 = scmp.eq.s32.totalorder %s19, 1
    %p84 = por %p82, %p83
    %p86 = scmp.ne.s32.totalorder %s71, %s85
    %p87 = scmp.eq.s32.totalorder %s19, 0
    %p88 = por %p86, %p87
    %s90 = sadd.s32 %s89, 1
    %p93 = scmp.eq.s32.totalorder %s13, 1
    %p94 = scmp.ne.s32.totalorder %s89, %s91
    %p95 = scmp.eq.s32.totalorder %s13, 0
    %p96 = por %p94, %p95
    %p97 = scmp.ne.s32.totalorder %s89, %s91
    %p98 = scmp.eq.s32.totalorder %s18, 1
    %p99 = por %p97, %p98
    %p100 = scmp.ne.s32.totalorder %s91, %s92
    %p101 = scmp.eq.s32.totalorder %s18, 0
    %p102 = por %p100, %p101
    %p103 = scmp.ne.s32.totalorder %s91, %s92
    %p104 = scmp.eq.s32.totalorder %s19, 1
    %p105 = por %p103, %p104
    %p107 = scmp.ne.s32.totalorder %s92, %s106
    %p108 = scmp.eq.s32.totalorder %s19, 0
    %p109 = por %p107, %p108
    %s111 = sadd.s32 %s110, 1
    %p114 = scmp.eq.s32.totalorder %s13, 1
    %p115 = scmp.ne.s32.totalorder %s110, %s112
    %p116 = scmp.eq.s32.totalorder %s13, 0
    %p117 = por %p115, %p116
    %p118 = scmp.ne.s32.totalorder %s110, %s112
    %p119 = scmp.eq.s32.totalorder %s18, 1
    %p120 = por %p118, %p119
    %p121 = scmp.ne.s32.totalorder %s112, %s113
    %p122 = scmp.eq.s32.totalorder %s18, 0
    %p123 = por %p121, %p122
    %p124 = scmp.ne.s32.totalorder %s112, %s113
    %p125 = scmp.eq.s32.totalorder %s19, 1
    %p126 = por %p124, %p125
    %p128 = scmp.ne.s32.totalorder %s113, %s127
    %p129 = scmp.eq.s32.totalorder %s19, 0
    %p130 = por %p128, %p129
    %s132 = sadd.s32 %s131, 1
    %p135 = scmp.eq.s32.totalorder %s13, 1
    %p136 = scmp.ne.s32.totalorder %s131, %s133
    %p137 = scmp.eq.s32.totalorder %s13, 0
    %p138 = por %p136, %p137
    %p139 = scmp.ne.s32.totalorder %s131, %s133
    %p140 = scmp.eq.s32.totalorder %s18, 1
    %p141 = por %p139, %p140
    %p142 = scmp.ne.s32.totalorder %s133, %s134
    %p143 = scmp.eq.s32.totalorder %s18, 0
    %p144 = por %p142, %p143
    %p145 = scmp.ne.s32.totalorder %s133, %s134
    %p146 = scmp.eq.s32.totalorder %s19, 1
    %p147 = por %p145, %p146
    %p149 = scmp.ne.s32.totalorder %s134, %s148
    %p150 = scmp.eq.s32.totalorder %s19, 0
    %p151 = por %p149, %p150
    %s153 = sadd.s32 %s152, 1
    %p156 = scmp.eq.s32.totalorder %s13, 1
    %p157 = scmp.ne.s32.totalorder %s152, %s154
    %p158 = scmp.eq.s32.totalorder %s13, 0
    %p159 = por %p157, %p158
    %p160 = scmp.ne.s32.totalorder %s152, %s154
    %p161 = scmp.eq.s32.totalorder %s18, 1
    %p162 = por %p160, %p161
    %p163 = scmp.ne.s32.totalorder %s154, %s155
    %p164 = scmp.eq.s32.totalorder %s18, 0
    %p165 = por %p163, %p164
    %p166 = scmp.ne.s32.totalorder %s154, %s155
    %p167 = scmp.eq.s32.totalorder %s19, 1
    %p168 = por %p166, %p167
    %p170 = scmp.ne.s32.totalorder %s155, %s169
    %p171 = scmp.eq.s32.totalorder %s19, 0
    %p172 = por %p170, %p171
    %s173 = ssub.s32 %s13, %s20
    %p174 = scmp.eq.s32.totalorder %s173, 0
    %s176 = sadd.s32 %s175, 1
    %s177 = scalar_select %p174, %s175, %s176
    %p180 = pneg %p174
    %p181 = scmp.eq.s32.totalorder %s13, 1
    %p182 = por %p180, %p181
    %p183 = scmp.ne.s32.totalorder %s175, %s178
    %p184 = scmp.eq.s32.totalorder %s13, 0
    %p185 = por %p183, %p184
    %p186 = scmp.ne.s32.totalorder %s175, %s178
    %p187 = scmp.eq.s32.totalorder %s18, 1
    %p188 = por %p186, %p187
    %p189 = scmp.ne.s32.totalorder %s178, %s179
    %p190 = scmp.eq.s32.totalorder %s18, 0
    %p191 = por %p189, %p190
    %p192 = scmp.ne.s32.totalorder %s178, %s179
    %p193 = scmp.eq.s32.totalorder %s19, 1
    %p194 = por %p192, %p193
    %p196 = scmp.ne.s32.totalorder %s179, %s195
    %p197 = scmp.eq.s32.totalorder %s19, 0
    %p198 = por %p196, %p197
    %p199 = scmp.le.s32.totalorder 1, %s13
    %p200 = scmp.lt.s32.totalorder %s13, 3
    %p201 = pnand %p199, %p200
    %p202 = pneg %p201
    // Predicated region
    $region9: #{complete_network_forward.2} parent=5 // pred_check
      _
    $region10: #{complete_network_forward.2} parent=5 // pred_check_branch
      %204 = sbr.rel (%p201) target = $region12
    $region11: #{complete_network_forward.2} parent=5 // pred_region
      %s205 = ssub.s32 %s13, 1
      // Predicated region
      $region13: #{complete_network_forward.2} parent=11 // pred_check
        %p206 = pneg %p60
      $region14: #{complete_network_forward.2} parent=11 // pred_check_branch
        %208 = sbr.rel (%p206) target = $region16
      $region15: #{complete_network_forward.2} parent=11 // pred_region
        _
      $region16: #{complete_network_forward.2} parent=11 // pred_fallthru
        _
      // Predicated region
      $region17: #{complete_network_forward.2} parent=11 // pred_check
        %p209 = pneg %p81
      $region18: #{complete_network_forward.2} parent=11 // pred_check_branch
        %211 = sbr.rel (%p209) target = $region20
      $region19: #{complete_network_forward.2} parent=11 // pred_region
        _
      $region20: #{complete_network_forward.2} parent=11 // pred_fallthru
        _
      // Predicated region
      $region21: #{complete_network_forward.2} parent=11 // pred_check
        %p212 = pneg %p102
      $region22: #{complete_network_forward.2} parent=11 // pred_check_branch
        %214 = sbr.rel (%p212) target = $region24
      $region23: #{complete_network_forward.2} parent=11 // pred_region
        _
      $region24: #{complete_network_forward.2} parent=11 // pred_fallthru
        _
      // Predicated region
      $region25: #{complete_network_forward.2} parent=11 // pred_check
        %p215 = pneg %p123
      $region26: #{complete_network_forward.2} parent=11 // pred_check_branch
        %217 = sbr.rel (%p215) target = $region28
      $region27: #{complete_network_forward.2} parent=11 // pred_region
        _
      $region28: #{complete_network_forward.2} parent=11 // pred_fallthru
        _
      // Predicated region
      $region29: #{complete_network_forward.2} parent=11 // pred_check
        %p218 = pneg %p144
      $region30: #{complete_network_forward.2} parent=11 // pred_check_branch
        %220 = sbr.rel (%p218) target = $region32
      $region31: #{complete_network_forward.2} parent=11 // pred_region
        _
      $region32: #{complete_network_forward.2} parent=11 // pred_fallthru
        _
      // Predicated region
      $region33: #{complete_network_forward.2} parent=11 // pred_check
        %p221 = pneg %p165
      $region34: #{complete_network_forward.2} parent=11 // pred_check_branch
        %223 = sbr.rel (%p221) target = $region36
      $region35: #{complete_network_forward.2} parent=11 // pred_region
        _
      $region36: #{complete_network_forward.2} parent=11 // pred_fallthru
        _
    $region12: #{complete_network_forward.2} parent=5 // pred_fallthru
      _
    %p224 = scmp.lt.s32.totalorder %s13, 2
    // Predicated region
    $region37: #{complete_network_forward.2} parent=5 // pred_check
      %p225 = pneg %p224
    $region38: #{complete_network_forward.2} parent=5 // pred_check_branch
      %227 = sbr.rel (%p225) target = $region40
    $region39: #{complete_network_forward.2} parent=5 // pred_region
      // Predicated region
      $region41: #{complete_network_forward.2} parent=39 // pred_check
        %p228 = pneg %p33
      $region42: #{complete_network_forward.2} parent=39 // pred_check_branch
        %230 = sbr.rel (%p228) target = $region44
      $region43: #{complete_network_forward.2} parent=39 // pred_region
        %p231 = scmp.lt.s32.totalorder %s13, 1
        %s232 = scalar_select %p231, %s13, 1
        %s233 = smul.addr %s232, 72
        %s234 = smul.addr %s233, 4
        %s235 = scalar_lea.vmem %s0, %s234
      $region44: #{complete_network_forward.2} parent=39 // pred_fallthru
        _
    $region40: #{complete_network_forward.2} parent=5 // pred_fallthru
      _
    %p236 = scmp.le.s32.totalorder 1, %s13
    %p237 = scmp.lt.s32.totalorder %s13, 3
    %p238 = pnand %p236, %p237
    %p239 = pneg %p238
    // Predicated region
    $region45: #{complete_network_forward.2} parent=5 // pred_check
      _
    $region46: #{complete_network_forward.2} parent=5 // pred_check_branch
      %241 = sbr.rel (%p238) target = $region48
    $region47: #{complete_network_forward.2} parent=5 // pred_region
      %s242 = ssub.s32 %s13, 1
      %p243 = scmp.lt.s32.totalorder %s18, 1
      %s244 = scalar_select %p243, %s18, 1
      %s245 = smul.addr %s244, 72
      %s246 = smul.addr %s245, 4
      %s247 = scalar_lea.vmem %s0, %s246
      %p248 = pneg %p39
      %p249 = pneg %p36
      %p250 = pneg %p60
      %p251 = pneg %p57
      %p252 = pneg %p81
      %p253 = pneg %p78
      %p254 = pneg %p102
      %p255 = pneg %p99
      %p256 = pneg %p123
      %p257 = pneg %p120
      %p258 = pneg %p144
      %p259 = pneg %p141
      %p260 = pneg %p165
      %p261 = pneg %p162
      %p262 = pneg %p191
      %p263 = pneg %p188
      %p264 = scmp.lt.s32.totalorder %s18, 1
      %s265 = scalar_select %p264, %s18, 1
      %s266 = smul.addr %s265, 8
      %s267 = smul.addr %s266, 8
      %s268 = scalar_lea.vmem %s7, %s267
      %p269 = scmp.lt.s32.totalorder %s18, 1
      %s270 = scalar_select %p269, %s18, 1
      %s271 = smul.addr %s270, 72
      %s272 = smul.addr %s271, 4
      %s273 = scalar_lea.vmem %s0, %s272
      %p274 = scmp.lt.s32.totalorder %s18, 1
      %s275 = scalar_select %p274, %s18, 1
      %s276 = smul.addr %s275, 8
      %s277 = smul.addr %s276, 8
      %s278 = scalar_lea.vmem %s7, %s277
      %v280 = vld [vmem:[%s273] sm:$0xf]
      %v281 = vld [vmem:[%s273 + $0x4] sm:$0x1]
      %v282 = vld [vmem:[%s273 + $0x8] sm:$0xf]
      %v283 = vld [vmem:[%s273 + $0xc] sm:$0x1]
      %v284 = vld [vmem:[%s273 + $0x10] sm:$0xf]
      %v285 = vld [vmem:[%s273 + $0x14] sm:$0x1]
      %v286 = vld [vmem:[%s273 + $0x18] sm:$0xf]
      %v287 = vld [vmem:[%s273 + $0x1c] sm:$0x1]
      %v288 = vld [vmem:[%s273 + $0x20] sm:$0xf]
      %v289 = vld [vmem:[%s273 + $0x24] sm:$0x1]
      %v290 = vld [vmem:[%s273 + $0x28] sm:$0xf]
      %v291 = vld [vmem:[%s273 + $0x2c] sm:$0x1]
      %v292 = vld [vmem:[%s273 + $0x30] sm:$0xf]
      %v293 = vld [vmem:[%s273 + $0x34] sm:$0x1]
      %v294 = vld [vmem:[%s273 + $0x38] sm:$0xf]
      %v295 = vld [vmem:[%s273 + $0x3c] sm:$0x1]
      %v296 = vld [vmem:[%s273 + $0x40] sm:$0xf]
      %v297 = vld [vmem:[%s273 + $0x44] sm:$0x1]
      %s298 = scalar_lea.vmem %s273, 72
      %v299 = vld [vmem:[%s298] sm:$0xf]
      %v300 = vld [vmem:[%s298 + $0x8] sm:$0xf]
      %v301 = vld [vmem:[%s298 + $0x10] sm:$0xf]
      %v302 = vld [vmem:[%s298 + $0x18] sm:$0xf]
      %v303 = vld [vmem:[%s298 + $0x20] sm:$0xf]
      %v304 = vld [vmem:[%s298 + $0x28] sm:$0xf]
      %v305 = vld [vmem:[%s298 + $0x30] sm:$0xf]
      %v306 = vld [vmem:[%s298 + $0x38] sm:$0xf]
      %v307 = vld [vmem:[%s298 + $0x40] sm:$0xf]
      %s308 = scalar_lea.vmem %s273, 144
      %v309 = vld [vmem:[%s308] sm:$0xf]
      %v310 = vld [vmem:[%s308 + $0x4] sm:$0x1]
      %v311 = vld [vmem:[%s308 + $0x8] sm:$0xf]
      %v312 = vld [vmem:[%s308 + $0xc] sm:$0x1]
      %v313 = vld [vmem:[%s308 + $0x10] sm:$0xf]
      %v314 = vld [vmem:[%s308 + $0x14] sm:$0x1]
      %v315 = vld [vmem:[%s308 + $0x18] sm:$0xf]
      %v316 = vld [vmem:[%s308 + $0x1c] sm:$0x1]
      %v317 = vld [vmem:[%s308 + $0x20] sm:$0xf]
      %v318 = vld [vmem:[%s308 + $0x24] sm:$0x1]
      %v319 = vld [vmem:[%s308 + $0x28] sm:$0xf]
      %v320 = vld [vmem:[%s308 + $0x2c] sm:$0x1]
      %v321 = vld [vmem:[%s308 + $0x30] sm:$0xf]
      %v322 = vld [vmem:[%s308 + $0x34] sm:$0x1]
      %v323 = vld [vmem:[%s308 + $0x38] sm:$0xf]
      %v324 = vld [vmem:[%s308 + $0x3c] sm:$0x1]
      %s325 = scalar_lea.vmem %s273, 216
      %v326 = vld [vmem:[%s325] sm:$0xf]
      %v327 = vld [vmem:[%s325 + $0x8] sm:$0xf]
      %v328 = vld [vmem:[%s325 + $0x10] sm:$0xf]
      %v329 = vld [vmem:[%s325 + $0x18] sm:$0xf]
      %v330 = vld [vmem:[%s325 + $0x20] sm:$0xf]
      %v331 = vld [vmem:[%s325 + $0x28] sm:$0xf]
      %v332 = vld [vmem:[%s325 + $0x30] sm:$0xf]
      %v333 = vld [vmem:[%s325 + $0x38] sm:$0xf]
      %v334 = vld [vmem:[%s1] sm:$0x3]
      %s335 = scalar_lea.vmem %s1, 2
      %v336 = vld [vmem:[%s335] sm:$0x3]
      %v345 = vunpack.c.l.b16 %v299
      %v346 = vunpack.c.l.b16 %v300
      %v347 = vunpack.c.l.b16 %v301
      %v348 = vunpack.c.l.b16 %v302
      %v349 = vunpack.c.l.b16 %v303
      %v350 = vunpack.c.l.b16 %v304
      %v351 = vunpack.c.l.b16 %v305
      %v352 = vunpack.c.l.b16 %v306
      %v353 = vpack.c.b16 %v346, %v345
      %v354 = vpack.c.b16 %v348, %v347
      %v355 = vpack.c.b16 %v350, %v349
      %v356 = vpack.c.b16 %v352, %v351
      %vm357 = vcmask 31744
      %v359 = vsel %vm357, %v353, 0
      %v362 = vsel %vm357, %v354, 0
      %v365 = vsel %vm357, %v355, 0
      %v368 = vsel %vm357, %v356, 0
      %vm370 = vcmask 1041408
      %v372 = vsel %vm370, %v336, 0
      %374 = vmatpush.bf16.msra.mxu0 0
      %375 = vmatpush.bf16.msra.mxu0 0
      %376 = vmatpush.bf16.msra.mxu0 0
      %377 = vmatpush.bf16.msra.mxu0 0
      %378 = vmatpush.bf16.msra.mxu0 0
      %379 = vmatpush.bf16.msra.mxu0 0
      %380 = vmatpush.bf16.msra.mxu0 0
      %381 = vmatpush.bf16.msra.mxu0 %v372
      %382 = vmatmul.bf16.gmra.mxu0 %v359
      %v383 = vpop.f32.mrf.mxu0
      %v384 = vadd.f32 0.0, %v383
      %v385 = vpop.f32.mrf.mxu0
      %v386 = vadd.f32 0.0, %v385
      %387 = vmatmul.bf16.gmra.mxu0 %v362
      %v388 = vpop.f32.mrf.mxu0
      %v389 = vadd.f32 0.0, %v388
      %v390 = vpop.f32.mrf.mxu0
      %v391 = vadd.f32 0.0, %v390
      %392 = vmatmul.bf16.gmra.mxu0 %v365
      %v393 = vpop.f32.mrf.mxu0
      %v394 = vadd.f32 0.0, %v393
      %v395 = vpop.f32.mrf.mxu0
      %v396 = vadd.f32 0.0, %v395
      %397 = vmatmul.bf16.gmra.mxu0 %v368
      %v398 = vpop.f32.mrf.mxu0
      %v399 = vadd.f32 0.0, %v398
      %v400 = vpop.f32.mrf.mxu0
      %v401 = vadd.f32 0.0, %v400
      %402 = vdwg.mxu0
      %v411 = vunpack.c.l.b16 %v280
      %v412 = vunpack.c.l.b16 %v282
      %v413 = vunpack.c.l.b16 %v284
      %v414 = vunpack.c.l.b16 %v286
      %v415 = vunpack.c.l.b16 %v288
      %v416 = vunpack.c.l.b16 %v290
      %v417 = vunpack.c.l.b16 %v292
      %v418 = vunpack.c.l.b16 %v294
      %v419 = vpack.c.b16 %v412, %v411
      %v420 = vpack.c.b16 %v414, %v413
      %v421 = vpack.c.b16 %v416, %v415
      %v422 = vpack.c.b16 %v418, %v417
      %v424 = vsel %vm357, %v419, 0
      %v427 = vsel %vm357, %v420, 0
      %v430 = vsel %vm357, %v421, 0
      %v433 = vsel %vm357, %v422, 0
      %v436 = vsel %vm370, %v334, 0
      %438 = vmatpush.bf16.msra.mxu0 0
      %439 = vmatpush.bf16.msra.mxu0 0
      %440 = vmatpush.bf16.msra.mxu0 0
      %441 = vmatpush.bf16.msra.mxu0 0
      %442 = vmatpush.bf16.msra.mxu0 0
      %443 = vmatpush.bf16.msra.mxu0 0
      %444 = vmatpush.bf16.msra.mxu0 0
      %445 = vmatpush.bf16.msra.mxu0 %v436
      %446 = vmatmul.bf16.gmra.mxu0 %v424
      %v447 = vpop.f32.mrf.mxu0
      %v448 = vadd.f32 %v384, %v447
      %v449 = vpop.f32.mrf.mxu0
      %v450 = vadd.f32 %v386, %v449
      %451 = vmatmul.bf16.gmra.mxu0 %v427
      %v452 = vpop.f32.mrf.mxu0
      %v453 = vadd.f32 %v389, %v452
      %v454 = vpop.f32.mrf.mxu0
      %v455 = vadd.f32 %v391, %v454
      %456 = vmatmul.bf16.gmra.mxu0 %v430
      %v457 = vpop.f32.mrf.mxu0
      %v458 = vadd.f32 %v394, %v457
      %v459 = vpop.f32.mrf.mxu0
      %v460 = vadd.f32 %v396, %v459
      %461 = vmatmul.bf16.gmra.mxu0 %v433
      %v462 = vpop.f32.mrf.mxu0
      %v463 = vadd.f32 %v399, %v462
      %v464 = vpop.f32.mrf.mxu0
      %v465 = vadd.f32 %v401, %v464
      %466 = vdwg.mxu0
      %vm467 = vsmask.f32 3328
      %vm468 = vsmask.f32 7440
      %vm469 = vmor %vm467, %vm468
      %v471 = vshrl.u32 %v280, 16
      %v473 = vrot.slane %v471, 4
      %v474 = vshll.u32 %v280, 16
      %v476 = vrot.slane %v474, 5
      %v477 = vor.u32 %v473, %v476
      %v478 = vrot.slane %v477, 4
      %v480 = vshll.u32 %v281, 16
      %v482 = vrot.slane %v480, 5
      %v483 = vsel %vm469, %v478, %v482
      %v485 = vshrl.u32 %v282, 16
      %v487 = vrot.slane %v485, 4
      %v488 = vshll.u32 %v282, 16
      %v490 = vrot.slane %v488, 5
      %v491 = vor.u32 %v487, %v490
      %v492 = vrot.slane %v491, 4
      %v494 = vshll.u32 %v283, 16
      %v496 = vrot.slane %v494, 5
      %v497 = vsel %vm469, %v492, %v496
      %v499 = vshrl.u32 %v284, 16
      %v501 = vrot.slane %v499, 4
      %v502 = vshll.u32 %v284, 16
      %v504 = vrot.slane %v502, 5
      %v505 = vor.u32 %v501, %v504
      %v506 = vrot.slane %v505, 4
      %v508 = vshll.u32 %v285, 16
      %v510 = vrot.slane %v508, 5
      %v511 = vsel %vm469, %v506, %v510
      %v513 = vshrl.u32 %v286, 16
      %v515 = vrot.slane %v513, 4
      %v516 = vshll.u32 %v286, 16
      %v518 = vrot.slane %v516, 5
      %v519 = vor.u32 %v515, %v518
      %v520 = vrot.slane %v519, 4
      %v522 = vshll.u32 %v287, 16
      %v524 = vrot.slane %v522, 5
      %v525 = vsel %vm469, %v520, %v524
      %v527 = vshrl.u32 %v288, 16
      %v529 = vrot.slane %v527, 4
      %v530 = vshll.u32 %v288, 16
      %v532 = vrot.slane %v530, 5
      %v533 = vor.u32 %v529, %v532
      %v534 = vrot.slane %v533, 4
      %v536 = vshll.u32 %v289, 16
      %v538 = vrot.slane %v536, 5
      %v539 = vsel %vm469, %v534, %v538
      %v541 = vshrl.u32 %v290, 16
      %v543 = vrot.slane %v541, 4
      %v544 = vshll.u32 %v290, 16
      %v546 = vrot.slane %v544, 5
      %v547 = vor.u32 %v543, %v546
      %v548 = vrot.slane %v547, 4
      %v550 = vshll.u32 %v291, 16
      %v552 = vrot.slane %v550, 5
      %v553 = vsel %vm469, %v548, %v552
      %v555 = vshrl.u32 %v292, 16
      %v557 = vrot.slane %v555, 4
      %v558 = vshll.u32 %v292, 16
      %v560 = vrot.slane %v558, 5
      %v561 = vor.u32 %v557, %v560
      %v562 = vrot.slane %v561, 4
      %v564 = vshll.u32 %v293, 16
      %v566 = vrot.slane %v564, 5
      %v567 = vsel %vm469, %v562, %v566
      %v569 = vshrl.u32 %v294, 16
      %v571 = vrot.slane %v569, 4
      %v572 = vshll.u32 %v294, 16
      %v574 = vrot.slane %v572, 5
      %v575 = vor.u32 %v571, %v574
      %v576 = vrot.slane %v575, 4
      %v578 = vshll.u32 %v295, 16
      %v580 = vrot.slane %v578, 5
      %v581 = vsel %vm469, %v576, %v580
      %s582 = scalar_lea.vmem %s1, 4
      %v583 = vld [vmem:[%s582] sm:$0x3]
      %v584 = vunpack.c.l.b16 %v483
      %v585 = vunpack.c.l.b16 %v497
      %v586 = vunpack.c.l.b16 %v511
      %v587 = vunpack.c.l.b16 %v525
      %v588 = vunpack.c.l.b16 %v539
      %v589 = vunpack.c.l.b16 %v553
      %v590 = vunpack.c.l.b16 %v567
      %v591 = vunpack.c.l.b16 %v581
      %v592 = vpack.c.b16 %v585, %v584
      %v593 = vpack.c.b16 %v587, %v586
      %v594 = vpack.c.b16 %v589, %v588
      %v595 = vpack.c.b16 %v591, %v590
      %v597 = vsel %vm357, %v592, 0
      %v600 = vsel %vm357, %v593, 0
      %v603 = vsel %vm357, %v594, 0
      %v606 = vsel %vm357, %v595, 0
      %v609 = vsel %vm370, %v583, 0
      %611 = vmatpush.bf16.msra.mxu0 0
      %612 = vmatpush.bf16.msra.mxu0 0
      %613 = vmatpush.bf16.msra.mxu0 0
      %614 = vmatpush.bf16.msra.mxu0 0
      %615 = vmatpush.bf16.msra.mxu0 0
      %616 = vmatpush.bf16.msra.mxu0 0
      %617 = vmatpush.bf16.msra.mxu0 0
      %618 = vmatpush.bf16.msra.mxu0 %v609
      %619 = vmatmul.bf16.gmra.mxu0 %v597
      %v620 = vpop.f32.mrf.mxu0
      %v621 = vadd.f32 0.0, %v620
      %v622 = vpop.f32.mrf.mxu0
      %v623 = vadd.f32 0.0, %v622
      %624 = vmatmul.bf16.gmra.mxu0 %v600
      %v625 = vpop.f32.mrf.mxu0
      %v626 = vadd.f32 0.0, %v625
      %v627 = vpop.f32.mrf.mxu0
      %v628 = vadd.f32 0.0, %v627
      %629 = vmatmul.bf16.gmra.mxu0 %v603
      %v630 = vpop.f32.mrf.mxu0
      %v631 = vadd.f32 0.0, %v630
      %v632 = vpop.f32.mrf.mxu0
      %v633 = vadd.f32 0.0, %v632
      %634 = vmatmul.bf16.gmra.mxu0 %v606
      %v635 = vpop.f32.mrf.mxu0
      %v636 = vadd.f32 0.0, %v635
      %v637 = vpop.f32.mrf.mxu0
      %v638 = vadd.f32 0.0, %v637
      %639 = vdwg.mxu0
      %v640 = vadd.f32 %v448, %v621
      %v641 = vadd.f32 %v450, %v623
      %v642 = vadd.f32 %v453, %v626
      %v643 = vadd.f32 %v455, %v628
      %v644 = vadd.f32 %v458, %v631
      %v645 = vadd.f32 %v460, %v633
      %v646 = vadd.f32 %v463, %v636
      %v647 = vadd.f32 %v465, %v638
      %s648 = scalar_lea.vmem %s1, 6
      %v649 = vld [vmem:[%s648] sm:$0x3]
      %v658 = vunpack.c.l.b16 %v309
      %v659 = vunpack.c.l.b16 %v311
      %v660 = vunpack.c.l.b16 %v313
      %v661 = vunpack.c.l.b16 %v315
      %v662 = vunpack.c.l.b16 %v317
      %v663 = vunpack.c.l.b16 %v319
      %v664 = vunpack.c.l.b16 %v321
      %v665 = vunpack.c.l.b16 %v323
      %v666 = vpack.c.b16 %v659, %v658
      %v667 = vpack.c.b16 %v661, %v660
      %v668 = vpack.c.b16 %v663, %v662
      %v669 = vpack.c.b16 %v665, %v664
      %v671 = vsel %vm357, %v666, 0
      %v674 = vsel %vm357, %v667, 0
      %v677 = vsel %vm357, %v668, 0
      %v680 = vsel %vm357, %v669, 0
      %v683 = vsel %vm370, %v649, 0
      %685 = vmatpush.bf16.msra.mxu0 0
      %686 = vmatpush.bf16.msra.mxu0 0
      %687 = vmatpush.bf16.msra.mxu0 0
      %688 = vmatpush.bf16.msra.mxu0 0
      %689 = vmatpush.bf16.msra.mxu0 0
      %690 = vmatpush.bf16.msra.mxu0 0
      %691 = vmatpush.bf16.msra.mxu0 0
      %692 = vmatpush.bf16.msra.mxu0 %v683
      %693 = vmatmul.bf16.gmra.mxu0 %v671
      %v694 = vpop.f32.mrf.mxu0
      %v695 = vadd.f32 0.0, %v694
      %v696 = vpop.f32.mrf.mxu0
      %v697 = vadd.f32 0.0, %v696
      %698 = vmatmul.bf16.gmra.mxu0 %v674
      %v699 = vpop.f32.mrf.mxu0
      %v700 = vadd.f32 0.0, %v699
      %v701 = vpop.f32.mrf.mxu0
      %v702 = vadd.f32 0.0, %v701
      %703 = vmatmul.bf16.gmra.mxu0 %v677
      %v704 = vpop.f32.mrf.mxu0
      %v705 = vadd.f32 0.0, %v704
      %v706 = vpop.f32.mrf.mxu0
      %v707 = vadd.f32 0.0, %v706
      %708 = vmatmul.bf16.gmra.mxu0 %v680
      %v709 = vpop.f32.mrf.mxu0
      %v710 = vadd.f32 0.0, %v709
      %v711 = vpop.f32.mrf.mxu0
      %v712 = vadd.f32 0.0, %v711
      %713 = vdwg.mxu0
      %v714 = vadd.f32 %v640, %v695
      %v715 = vadd.f32 %v641, %v697
      %v716 = vadd.f32 %v642, %v700
      %v717 = vadd.f32 %v643, %v702
      %v718 = vadd.f32 %v644, %v705
      %v719 = vadd.f32 %v645, %v707
      %v720 = vadd.f32 %v646, %v710
      %v721 = vadd.f32 %v647, %v712
      %s722 = scalar_lea.vmem %s1, 8
      %v723 = vld [vmem:[%s722] sm:$0x3]
      %v732 = vunpack.c.l.b16 %v326
      %v733 = vunpack.c.l.b16 %v327
      %v734 = vunpack.c.l.b16 %v328
      %v735 = vunpack.c.l.b16 %v329
      %v736 = vunpack.c.l.b16 %v330
      %v737 = vunpack.c.l.b16 %v331
      %v738 = vunpack.c.l.b16 %v332
      %v739 = vunpack.c.l.b16 %v333
      %v740 = vpack.c.b16 %v733, %v732
      %v741 = vpack.c.b16 %v735, %v734
      %v742 = vpack.c.b16 %v737, %v736
      %v743 = vpack.c.b16 %v739, %v738
      %v745 = vsel %vm357, %v740, 0
      %v748 = vsel %vm357, %v741, 0
      %v751 = vsel %vm357, %v742, 0
      %v754 = vsel %vm357, %v743, 0
      %v757 = vsel %vm370, %v723, 0
      %759 = vmatpush.bf16.msra.mxu0 0
      %760 = vmatpush.bf16.msra.mxu0 0
      %761 = vmatpush.bf16.msra.mxu0 0
      %762 = vmatpush.bf16.msra.mxu0 0
      %763 = vmatpush.bf16.msra.mxu0 0
      %764 = vmatpush.bf16.msra.mxu0 0
      %765 = vmatpush.bf16.msra.mxu0 0
      %766 = vmatpush.bf16.msra.mxu0 %v757
      %767 = vmatmul.bf16.gmra.mxu0 %v745
      %v768 = vpop.f32.mrf.mxu0
      %v769 = vadd.f32 0.0, %v768
      %v770 = vpop.f32.mrf.mxu0
      %v771 = vadd.f32 0.0, %v770
      %772 = vmatmul.bf16.gmra.mxu0 %v748
      %v773 = vpop.f32.mrf.mxu0
      %v774 = vadd.f32 0.0, %v773
      %v775 = vpop.f32.mrf.mxu0
      %v776 = vadd.f32 0.0, %v775
      %777 = vmatmul.bf16.gmra.mxu0 %v751
      %v778 = vpop.f32.mrf.mxu0
      %v779 = vadd.f32 0.0, %v778
      %v780 = vpop.f32.mrf.mxu0
      %v781 = vadd.f32 0.0, %v780
      %782 = vmatmul.bf16.gmra.mxu0 %v754
      %v783 = vpop.f32.mrf.mxu0
      %v784 = vadd.f32 0.0, %v783
      %v785 = vpop.f32.mrf.mxu0
      %v786 = vadd.f32 0.0, %v785
      %787 = vdwg.mxu0
      %v788 = vadd.f32 %v714, %v769
      %v789 = vadd.f32 %v715, %v771
      %v790 = vadd.f32 %v716, %v774
      %v791 = vadd.f32 %v717, %v776
      %v792 = vadd.f32 %v718, %v779
      %v793 = vadd.f32 %v719, %v781
      %v794 = vadd.f32 %v720, %v784
      %v795 = vadd.f32 %v721, %v786
      %v797 = vshrl.u32 %v309, 16
      %v799 = vrot.slane %v797, 4
      %v800 = vshll.u32 %v309, 16
      %v802 = vrot.slane %v800, 5
      %v803 = vor.u32 %v799, %v802
      %v804 = vrot.slane %v803, 4
      %v806 = vshll.u32 %v310, 16
      %v808 = vrot.slane %v806, 5
      %v809 = vsel %vm469, %v804, %v808
      %v811 = vshrl.u32 %v311, 16
      %v813 = vrot.slane %v811, 4
      %v814 = vshll.u32 %v311, 16
      %v816 = vrot.slane %v814, 5
      %v817 = vor.u32 %v813, %v816
      %v818 = vrot.slane %v817, 4
      %v820 = vshll.u32 %v312, 16
      %v822 = vrot.slane %v820, 5
      %v823 = vsel %vm469, %v818, %v822
      %v825 = vshrl.u32 %v313, 16
      %v827 = vrot.slane %v825, 4
      %v828 = vshll.u32 %v313, 16
      %v830 = vrot.slane %v828, 5
      %v831 = vor.u32 %v827, %v830
      %v832 = vrot.slane %v831, 4
      %v834 = vshll.u32 %v314, 16
      %v836 = vrot.slane %v834, 5
      %v837 = vsel %vm469, %v832, %v836
      %v839 = vshrl.u32 %v315, 16
      %v841 = vrot.slane %v839, 4
      %v842 = vshll.u32 %v315, 16
      %v844 = vrot.slane %v842, 5
      %v845 = vor.u32 %v841, %v844
      %v846 = vrot.slane %v845, 4
      %v848 = vshll.u32 %v316, 16
      %v850 = vrot.slane %v848, 5
      %v851 = vsel %vm469, %v846, %v850
      %v853 = vshrl.u32 %v317, 16
      %v855 = vrot.slane %v853, 4
      %v856 = vshll.u32 %v317, 16
      %v858 = vrot.slane %v856, 5
      %v859 = vor.u32 %v855, %v858
      %v860 = vrot.slane %v859, 4
      %v862 = vshll.u32 %v318, 16
      %v864 = vrot.slane %v862, 5
      %v865 = vsel %vm469, %v860, %v864
      %v867 = vshrl.u32 %v319, 16
      %v869 = vrot.slane %v867, 4
      %v870 = vshll.u32 %v319, 16
      %v872 = vrot.slane %v870, 5
      %v873 = vor.u32 %v869, %v872
      %v874 = vrot.slane %v873, 4
      %v876 = vshll.u32 %v320, 16
      %v878 = vrot.slane %v876, 5
      %v879 = vsel %vm469, %v874, %v878
      %v881 = vshrl.u32 %v321, 16
      %v883 = vrot.slane %v881, 4
      %v884 = vshll.u32 %v321, 16
      %v886 = vrot.slane %v884, 5
      %v887 = vor.u32 %v883, %v886
      %v888 = vrot.slane %v887, 4
      %v890 = vshll.u32 %v322, 16
      %v892 = vrot.slane %v890, 5
      %v893 = vsel %vm469, %v888, %v892
      %v895 = vshrl.u32 %v323, 16
      %v897 = vrot.slane %v895, 4
      %v898 = vshll.u32 %v323, 16
      %v900 = vrot.slane %v898, 5
      %v901 = vor.u32 %v897, %v900
      %v902 = vrot.slane %v901, 4
      %v904 = vshll.u32 %v324, 16
      %v906 = vrot.slane %v904, 5
      %v907 = vsel %vm469, %v902, %v906
      %s908 = scalar_lea.vmem %s1, 10
      %v909 = vld [vmem:[%s908] sm:$0x3]
      %v910 = vunpack.c.l.b16 %v809
      %v911 = vunpack.c.l.b16 %v823
      %v912 = vunpack.c.l.b16 %v837
      %v913 = vunpack.c.l.b16 %v851
      %v914 = vunpack.c.l.b16 %v865
      %v915 = vunpack.c.l.b16 %v879
      %v916 = vunpack.c.l.b16 %v893
      %v917 = vunpack.c.l.b16 %v907
      %v918 = vpack.c.b16 %v911, %v910
      %v919 = vpack.c.b16 %v913, %v912
      %v920 = vpack.c.b16 %v915, %v914
      %v921 = vpack.c.b16 %v917, %v916
      %v923 = vsel %vm357, %v918, 0
      %v926 = vsel %vm357, %v919, 0
      %v929 = vsel %vm357, %v920, 0
      %v932 = vsel %vm357, %v921, 0
      %v935 = vsel %vm370, %v909, 0
      %937 = vmatpush.bf16.msra.mxu0 0
      %938 = vmatpush.bf16.msra.mxu0 0
      %939 = vmatpush.bf16.msra.mxu0 0
      %940 = vmatpush.bf16.msra.mxu0 0
      %941 = vmatpush.bf16.msra.mxu0 0
      %942 = vmatpush.bf16.msra.mxu0 0
      %943 = vmatpush.bf16.msra.mxu0 0
      %944 = vmatpush.bf16.msra.mxu0 %v935
      %945 = vmatmul.bf16.gmra.mxu0 %v923
      %v946 = vpop.f32.mrf.mxu0
      %v947 = vadd.f32 0.0, %v946
      %v948 = vpop.f32.mrf.mxu0
      %v949 = vadd.f32 0.0, %v948
      %950 = vmatmul.bf16.gmra.mxu0 %v926
      %v951 = vpop.f32.mrf.mxu0
      %v952 = vadd.f32 0.0, %v951
      %v953 = vpop.f32.mrf.mxu0
      %v954 = vadd.f32 0.0, %v953
      %955 = vmatmul.bf16.gmra.mxu0 %v929
      %v956 = vpop.f32.mrf.mxu0
      %v957 = vadd.f32 0.0, %v956
      %v958 = vpop.f32.mrf.mxu0
      %v959 = vadd.f32 0.0, %v958
      %960 = vmatmul.bf16.gmra.mxu0 %v932
      %v961 = vpop.f32.mrf.mxu0
      %v962 = vadd.f32 0.0, %v961
      %v963 = vpop.f32.mrf.mxu0
      %v964 = vadd.f32 0.0, %v963
      %965 = vdwg.mxu0
      %v966 = vadd.f32 %v788, %v947
      %v967 = vadd.f32 %v789, %v949
      %v968 = vadd.f32 %v790, %v952
      %v969 = vadd.f32 %v791, %v954
      %v970 = vadd.f32 %v792, %v957
      %v971 = vadd.f32 %v793, %v959
      %v972 = vadd.f32 %v794, %v962
      %v973 = vadd.f32 %v795, %v964
      %s974 = scalar_lea.vmem %s1, 12
      %v975 = vld [vmem:[%s974] sm:$0x3]
      %v977 = vunpack.c.l.b16 %v296
      %v978 = vpack.c.b16 %v413, %v412
      %v979 = vpack.c.b16 %v415, %v414
      %v980 = vpack.c.b16 %v417, %v416
      %v981 = vpack.c.b16 %v977, %v418
      %v983 = vsel %vm357, %v978, 0
      %v986 = vsel %vm357, %v979, 0
      %v989 = vsel %vm357, %v980, 0
      %v992 = vsel %vm357, %v981, 0
      %v995 = vsel %vm370, %v975, 0
      %997 = vmatpush.bf16.msra.mxu0 0
      %998 = vmatpush.bf16.msra.mxu0 0
      %999 = vmatpush.bf16.msra.mxu0 0
      %1000 = vmatpush.bf16.msra.mxu0 0
      %1001 = vmatpush.bf16.msra.mxu0 0
      %1002 = vmatpush.bf16.msra.mxu0 0
      %1003 = vmatpush.bf16.msra.mxu0 0
      %1004 = vmatpush.bf16.msra.mxu0 %v995
      %1005 = vmatmul.bf16.gmra.mxu0 %v983
      %v1006 = vpop.f32.mrf.mxu0
      %v1007 = vadd.f32 0.0, %v1006
      %v1008 = vpop.f32.mrf.mxu0
      %v1009 = vadd.f32 0.0, %v1008
      %1010 = vmatmul.bf16.gmra.mxu0 %v986
      %v1011 = vpop.f32.mrf.mxu0
      %v1012 = vadd.f32 0.0, %v1011
      %v1013 = vpop.f32.mrf.mxu0
      %v1014 = vadd.f32 0.0, %v1013
      %1015 = vmatmul.bf16.gmra.mxu0 %v989
      %v1016 = vpop.f32.mrf.mxu0
      %v1017 = vadd.f32 0.0, %v1016
      %v1018 = vpop.f32.mrf.mxu0
      %v1019 = vadd.f32 0.0, %v1018
      %1020 = vmatmul.bf16.gmra.mxu0 %v992
      %v1021 = vpop.f32.mrf.mxu0
      %v1022 = vadd.f32 0.0, %v1021
      %v1023 = vpop.f32.mrf.mxu0
      %v1024 = vadd.f32 0.0, %v1023
      %1025 = vdwg.mxu0
      %v1026 = vadd.f32 %v966, %v1007
      %v1027 = vadd.f32 %v967, %v1009
      %v1028 = vadd.f32 %v968, %v1012
      %v1029 = vadd.f32 %v969, %v1014
      %v1030 = vadd.f32 %v970, %v1017
      %v1031 = vadd.f32 %v971, %v1019
      %v1032 = vadd.f32 %v972, %v1022
      %v1033 = vadd.f32 %v973, %v1024
      %s1034 = scalar_lea.vmem %s1, 14
      %v1035 = vld [vmem:[%s1034] sm:$0x3]
      %v1037 = vunpack.c.l.b16 %v307
      %v1038 = vpack.c.b16 %v347, %v346
      %v1039 = vpack.c.b16 %v349, %v348
      %v1040 = vpack.c.b16 %v351, %v350
      %v1041 = vpack.c.b16 %v1037, %v352
      %v1043 = vsel %vm357, %v1038, 0
      %v1046 = vsel %vm357, %v1039, 0
      %v1049 = vsel %vm357, %v1040, 0
      %v1052 = vsel %vm357, %v1041, 0
      %v1055 = vsel %vm370, %v1035, 0
      %1057 = vmatpush.bf16.msra.mxu0 0
      %1058 = vmatpush.bf16.msra.mxu0 0
      %1059 = vmatpush.bf16.msra.mxu0 0
      %1060 = vmatpush.bf16.msra.mxu0 0
      %1061 = vmatpush.bf16.msra.mxu0 0
      %1062 = vmatpush.bf16.msra.mxu0 0
      %1063 = vmatpush.bf16.msra.mxu0 0
      %1064 = vmatpush.bf16.msra.mxu0 %v1055
      %1065 = vmatmul.bf16.gmra.mxu0 %v1043
      %v1066 = vpop.f32.mrf.mxu0
      %v1067 = vadd.f32 0.0, %v1066
      %v1068 = vpop.f32.mrf.mxu0
      %v1069 = vadd.f32 0.0, %v1068
      %1070 = vmatmul.bf16.gmra.mxu0 %v1046
      %v1071 = vpop.f32.mrf.mxu0
      %v1072 = vadd.f32 0.0, %v1071
      %v1073 = vpop.f32.mrf.mxu0
      %v1074 = vadd.f32 0.0, %v1073
      %1075 = vmatmul.bf16.gmra.mxu0 %v1049
      %v1076 = vpop.f32.mrf.mxu0
      %v1077 = vadd.f32 0.0, %v1076
      %v1078 = vpop.f32.mrf.mxu0
      %v1079 = vadd.f32 0.0, %v1078
      %1080 = vmatmul.bf16.gmra.mxu0 %v1052
      %v1081 = vpop.f32.mrf.mxu0
      %v1082 = vadd.f32 0.0, %v1081
      %v1083 = vpop.f32.mrf.mxu0
      %v1084 = vadd.f32 0.0, %v1083
      %1085 = vdwg.mxu0
      %v1086 = vadd.f32 %v1026, %v1067
      %v1087 = vadd.f32 %v1027, %v1069
      %v1088 = vadd.f32 %v1028, %v1072
      %v1089 = vadd.f32 %v1029, %v1074
      %v1090 = vadd.f32 %v1030, %v1077
      %v1091 = vadd.f32 %v1031, %v1079
      %v1092 = vadd.f32 %v1032, %v1082
      %v1093 = vadd.f32 %v1033, %v1084
      %v1095 = vshrl.u32 %v296, 16
      %v1097 = vrot.slane %v1095, 4
      %v1098 = vshll.u32 %v296, 16
      %v1100 = vrot.slane %v1098, 5
      %v1101 = vor.u32 %v1097, %v1100
      %v1102 = vrot.slane %v1101, 4
      %v1104 = vshll.u32 %v297, 16
      %v1106 = vrot.slane %v1104, 5
      %v1107 = vsel %vm469, %v1102, %v1106
      %s1108 = scalar_lea.vmem %s1, 16
      %v1109 = vld [vmem:[%s1108] sm:$0x3]
      %v1110 = vunpack.c.l.b16 %v1107
      %v1111 = vpack.c.b16 %v586, %v585
      %v1112 = vpack.c.b16 %v588, %v587
      %v1113 = vpack.c.b16 %v590, %v589
      %v1114 = vpack.c.b16 %v1110, %v591
      %v1116 = vsel %vm357, %v1111, 0
      %v1119 = vsel %vm357, %v1112, 0
      %v1122 = vsel %vm357, %v1113, 0
      %v1125 = vsel %vm357, %v1114, 0
      %v1128 = vsel %vm370, %v1109, 0
      %1130 = vmatpush.bf16.msra.mxu0 0
      %1131 = vmatpush.bf16.msra.mxu0 0
      %1132 = vmatpush.bf16.msra.mxu0 0
      %1133 = vmatpush.bf16.msra.mxu0 0
      %1134 = vmatpush.bf16.msra.mxu0 0
      %1135 = vmatpush.bf16.msra.mxu0 0
      %1136 = vmatpush.bf16.msra.mxu0 0
      %1137 = vmatpush.bf16.msra.mxu0 %v1128
      %1138 = vmatmul.bf16.gmra.mxu0 %v1116
      %v1139 = vpop.f32.mrf.mxu0
      %v1140 = vadd.f32 0.0, %v1139
      %v1141 = vpop.f32.mrf.mxu0
      %v1142 = vadd.f32 0.0, %v1141
      %1143 = vmatmul.bf16.gmra.mxu0 %v1119
      %v1144 = vpop.f32.mrf.mxu0
      %v1145 = vadd.f32 0.0, %v1144
      %v1146 = vpop.f32.mrf.mxu0
      %v1147 = vadd.f32 0.0, %v1146
      %1148 = vmatmul.bf16.gmra.mxu0 %v1122
      %v1149 = vpop.f32.mrf.mxu0
      %v1150 = vadd.f32 0.0, %v1149
      %v1151 = vpop.f32.mrf.mxu0
      %v1152 = vadd.f32 0.0, %v1151
      %1153 = vmatmul.bf16.gmra.mxu0 %v1125
      %v1154 = vpop.f32.mrf.mxu0
      %v1155 = vadd.f32 0.0, %v1154
      %v1156 = vpop.f32.mrf.mxu0
      %v1157 = vadd.f32 0.0, %v1156
      %1158 = vdwg.mxu0
      %v1159 = vadd.f32 %v1086, %v1140
      %v1160 = vadd.f32 %v1087, %v1142
      %v1161 = vadd.f32 %v1088, %v1145
      %v1162 = vadd.f32 %v1089, %v1147
      %v1163 = vadd.f32 %v1090, %v1150
      %v1164 = vadd.f32 %v1091, %v1152
      %v1165 = vadd.f32 %v1092, %v1155
      %v1166 = vadd.f32 %v1093, %v1157
      %v1167 = vld [vmem:[%s2] sm:$0x1]
      %v1169 = vperm.slane %v1167, 0
      %v1171 = vadd.f32 %v1159, %v1169
      %v1172 = vadd.f32 %v1160, %v1169
      %v1173 = vadd.f32 %v1161, %v1169
      %v1174 = vadd.f32 %v1162, %v1169
      %v1175 = vadd.f32 %v1163, %v1169
      %v1176 = vadd.f32 %v1164, %v1169
      %v1177 = vadd.f32 %v1165, %v1169
      %v1178 = vadd.f32 %v1166, %v1169
      %v1179 = vmax.f32 %v1171, 0.0
      %v1180 = vmax.f32 %v1172, 0.0
      %v1181 = vmax.f32 %v1173, 0.0
      %v1182 = vmax.f32 %v1174, 0.0
      %v1183 = vmax.f32 %v1175, 0.0
      %v1184 = vmax.f32 %v1176, 0.0
      %v1185 = vmax.f32 %v1177, 0.0
      %v1186 = vmax.f32 %v1178, 0.0
      %v1187 = vpack.c.bf16 %v1180, %v1179
      %v1188 = vpack.c.bf16 %v1182, %v1181
      %v1189 = vpack.c.bf16 %v1184, %v1183
      %v1190 = vpack.c.bf16 %v1186, %v1185
      %v1191 = vld [vmem:[%s3] sm:$0xf]
      %v1192 = vld [vmem:[%s4] sm:$0x1]
      %v1194 = vperm.slane %v1192, 0
      %vm1196 = vcmask 64512
      %v1198 = vsel %vm1196, %v1187, 0
      %v1201 = vsel %vm1196, %v1188, 0
      %v1204 = vsel %vm1196, %v1189, 0
      %v1207 = vsel %vm1196, %v1190, 0
      %vm1209 = vcmask 1043456
      %v1211 = vsel %vm1209, %v1191, 0
      %1213 = vmatpush.bf16.msra.mxu0 0
      %1214 = vmatpush.bf16.msra.mxu0 0
      %1215 = vmatpush.bf16.msra.mxu0 0
      %1216 = vmatpush.bf16.msra.mxu0 0
      %1217 = vmatpush.bf16.msra.mxu0 0
      %1218 = vmatpush.bf16.msra.mxu0 0
      %1219 = vmatpush.bf16.msra.mxu0 0
      %1220 = vmatpush.bf16.msra.mxu0 %v1211
      %1221 = vmatmul.bf16.gmra.mxu0 %v1198
      %v1222 = vpop.f32.mrf.mxu0
      %v1223 = vadd.f32 %v1194, %v1222
      %v1224 = vpop.f32.mrf.mxu0
      %v1225 = vadd.f32 %v1194, %v1224
      %1226 = vmatmul.bf16.gmra.mxu0 %v1201
      %v1227 = vpop.f32.mrf.mxu0
      %v1228 = vadd.f32 %v1194, %v1227
      %v1229 = vpop.f32.mrf.mxu0
      %v1230 = vadd.f32 %v1194, %v1229
      %1231 = vmatmul.bf16.gmra.mxu0 %v1204
      %v1232 = vpop.f32.mrf.mxu0
      %v1233 = vadd.f32 %v1194, %v1232
      %v1234 = vpop.f32.mrf.mxu0
      %v1235 = vadd.f32 %v1194, %v1234
      %1236 = vmatmul.bf16.gmra.mxu0 %v1207
      %v1237 = vpop.f32.mrf.mxu0
      %v1238 = vadd.f32 %v1194, %v1237
      %v1239 = vpop.f32.mrf.mxu0
      %v1240 = vadd.f32 %v1194, %v1239
      %1241 = vdwg.mxu0
      %v1242 = vmax.f32 %v1223, 0.0
      %v1243 = vmax.f32 %v1225, 0.0
      %v1244 = vmax.f32 %v1228, 0.0
      %v1245 = vmax.f32 %v1230, 0.0
      %v1246 = vmax.f32 %v1233, 0.0
      %v1247 = vmax.f32 %v1235, 0.0
      %v1248 = vmax.f32 %v1238, 0.0
      %v1249 = vmax.f32 %v1240, 0.0
      %v1250 = vpack.c.bf16 %v1243, %v1242
      %v1251 = vpack.c.bf16 %v1245, %v1244
      %v1252 = vpack.c.bf16 %v1247, %v1246
      %v1253 = vpack.c.bf16 %v1249, %v1248
      %v1254 = vld [vmem:[%s5] sm:$0xf]
      %v1255 = vld [vmem:[%s5 + $0x4] sm:$0xf]
      %v1256 = vld [vmem:[%s6] sm:$0x1]
      %v1258 = vperm.slane %v1256, 0
      %v1262 = vunpack.c.l.b16 %v1254
      %v1263 = vunpack.c.l.b16 %v1255
      %v1264 = vpack.c.b16 %v1263, %v1262
      %vm1266 = vcmask 130048
      %v1268 = vsel %vm1266, %v1250, 0
      %v1271 = vsel %vm1266, %v1251, 0
      %v1274 = vsel %vm1266, %v1252, 0
      %v1277 = vsel %vm1266, %v1253, 0
      %1279 = vmatpush.bf16.msra.mxu0 0
      %1280 = vmatpush.bf16.msra.mxu0 0
      %1281 = vmatpush.bf16.msra.mxu0 0
      %1282 = vmatpush.bf16.msra.mxu0 0
      %1283 = vmatpush.bf16.msra.mxu0 0
      %1284 = vmatpush.bf16.msra.mxu0 0
      %1285 = vmatpush.bf16.msra.mxu0 0
      %1286 = vmatpush.bf16.msra.mxu0 %v1264
      %1287 = vmatmul.bf16.gmra.mxu0 %v1268
      %v1288 = vpop.f32.mrf.mxu0
      %v1289 = vadd.f32 %v1258, %v1288
      %v1290 = vpop.f32.mrf.mxu0
      %v1291 = vadd.f32 %v1258, %v1290
      %1292 = vmatmul.bf16.gmra.mxu0 %v1271
      %v1293 = vpop.f32.mrf.mxu0
      %v1294 = vadd.f32 %v1258, %v1293
      %v1295 = vpop.f32.mrf.mxu0
      %v1296 = vadd.f32 %v1258, %v1295
      %1297 = vmatmul.bf16.gmra.mxu0 %v1274
      %v1298 = vpop.f32.mrf.mxu0
      %v1299 = vadd.f32 %v1258, %v1298
      %v1300 = vpop.f32.mrf.mxu0
      %v1301 = vadd.f32 %v1258, %v1300
      %1302 = vmatmul.bf16.gmra.mxu0 %v1277
      %v1303 = vpop.f32.mrf.mxu0
      %v1304 = vadd.f32 %v1258, %v1303
      %v1305 = vpop.f32.mrf.mxu0
      %v1306 = vadd.f32 %v1258, %v1305
      %1307 = vdwg.mxu0
      %vm1308 = vcmask 39936
      %1309 = vst.msk [vmem:[%s278] sm:$0xff] %vm1308, %v1289
      %1310 = vst.msk [vmem:[%s278 + $0x8] sm:$0xff] %vm1308, %v1291
      %1311 = vst.msk [vmem:[%s278 + $0x10] sm:$0xff] %vm1308, %v1294
      %1312 = vst.msk [vmem:[%s278 + $0x18] sm:$0xff] %vm1308, %v1296
      %1313 = vst.msk [vmem:[%s278 + $0x20] sm:$0xff] %vm1308, %v1299
      %1314 = vst.msk [vmem:[%s278 + $0x28] sm:$0xff] %vm1308, %v1301
      %1315 = vst.msk [vmem:[%s278 + $0x30] sm:$0xff] %vm1308, %v1304
      %1316 = vst.msk [vmem:[%s278 + $0x38] sm:$0xff] %vm1308, %v1306
      %p1317 = scmp.lt.s32.totalorder %s18, 1
      %s1318 = scalar_select %p1317, %s18, 1
      %s1319 = smul.addr %s1318, 8
      %s1320 = smul.addr %s1319, 8
      %s1321 = scalar_lea.vmem %s7, %s1320
      // Predicated region
      $region49: #{complete_network_forward.2} parent=47 // pred_check
        %p1322 = pneg %p188
      $region50: #{complete_network_forward.2} parent=47 // pred_check_branch
        %1324 = sbr.rel (%p1322) target = $region52
      $region51: #{complete_network_forward.2} parent=47 // pred_region
        _
      $region52: #{complete_network_forward.2} parent=47 // pred_fallthru
        _
    $region48: #{complete_network_forward.2} parent=5 // pred_fallthru
      _
    %p1325 = scmp.le.s32.totalorder 2, %s13
    // Predicated region
    $region53: #{complete_network_forward.2} parent=5 // pred_check
      %p1326 = pneg %p1325
    $region54: #{complete_network_forward.2} parent=5 // pred_check_branch
      %1328 = sbr.rel (%p1326) target = $region56
    $region55: #{complete_network_forward.2} parent=5 // pred_region
      %s1329 = ssub.s32 %s13, 2
      // Predicated region
      $region57: #{complete_network_forward.2} parent=55 // pred_check
        %p1330 = pneg %p194
      $region58: #{complete_network_forward.2} parent=55 // pred_check_branch
        %1332 = sbr.rel (%p1330) target = $region60
      $region59: #{complete_network_forward.2} parent=55 // pred_region
        %p1333 = scmp.lt.s32.totalorder %s19, 1
        %s1334 = scalar_select %p1333, %s19, 1
        %s1335 = smul.addr %s1334, 8
        %s1336 = smul.addr %s1335, 8
        %s1337 = scalar_lea.vmem %s7, %s1336
      $region60: #{complete_network_forward.2} parent=55 // pred_fallthru
        _
    $region56: #{complete_network_forward.2} parent=5 // pred_fallthru
      _
  $region6: #{complete_network_forward.2} parent=0 // loop_footer
    %s17 = sadd.s32 1, %s13
  $region7: #{complete_network_forward.2} parent=0 // loop_footer_branch
    %12 = sbr.rel target = $region3
  $region8: #{complete_network_forward.2} parent=0 // loop_exit
    _

</llo_original>
